<compile_context>
chip_gen: v5e
topology: v5e:2x2
jax: 0.10.0
libtpu: 0.0.40
codegen_flags: <defaults>
</compile_context>

<pallas_src>
import jax
import jax.numpy as jnp
from jax.experimental import pallas as pl
from jax.experimental.pallas import tpu as pltpu


def _matmul_mean_kernel(x_ref, w_ref, o_ref):
    # x_ref: (bm, T*K) tile of flattened rows
    # w_ref: (T*K, 4) replicated/scaled weights, resident in VMEM
    # o_ref: (bm, 4) per-step output block
    o_ref[...] = jnp.dot(
        x_ref[...], w_ref[...], preferred_element_type=jnp.float32
    ).astype(o_ref.dtype)


def matmul_mean(inp, weights, *, block_rows=512):
    """inp: (B, S, T, K) float32, weights: (K, 4) float32 -> (B*S, 4) float32."""
    B, S, T, K = inp.shape
    BS = B * S
    TK = T * K

    # Exact algebraic rewrite: mean_T(x @ W) == reshape(x, (BS, T*K)) @ (tile(W,(T,1)) / T)
    x = inp.reshape(BS, TK)                                   # contiguous -> free reshape
    w_rep = (jnp.tile(weights, (T, 1)) / T).astype(jnp.float32)  # (T*K, 4), ~80 KiB

    # Row tile: multiple of 8 (sublane), capped at block_rows; partial last
    # block handled by Pallas via cdiv grid (no host-side padding copy).
    bm = min(block_rows, max(8, ((BS + 7) // 8) * 8))
    grid = (pl.cdiv(BS, bm),)

    # VMEM budget: x double-buffered + weights + output + headroom.
    vmem_limit = (2 * bm * TK * 4) + (2 * TK * 4 * 4) + (2 * bm * 4 * 4) + (4 << 20)

    out = pl.pallas_call(
        _matmul_mean_kernel,
        out_shape=jax.ShapeDtypeStruct((BS, 4), jnp.float32),
        grid_spec=pltpu.PrefetchScalarGridSpec(
            num_scalar_prefetch=0,
            grid=grid,
            in_specs=[
                pl.BlockSpec((bm, TK), lambda i: (i, 0)),
                pl.BlockSpec((TK, 4), lambda i: (0, 0)),
            ],
            out_specs=pl.BlockSpec((bm, 4), lambda i: (i, 0)),
        ),
        compiler_params=pltpu.CompilerParams(
            # Disjoint per-step output blocks -> rows shard across v7x's two
            # TensorCores; harmless on single-TC v5e/v6e.
            dimension_semantics=("parallel",),
            vmem_limit_bytes=int(vmem_limit),
        ),
    )(x, w_rep)
    return out


if __name__ == "__main__":
    key = jax.random.PRNGKey(0)
    k_w, k_x = jax.random.split(key)

    # Deterministic parameter init (stands in for torch.randn(640, 4))
    K = 640
    weights = jax.random.normal(k_w, (K, 4), dtype=jnp.float32)

    # Small input consistent with the forward: (B, S, T, K=640)
    B, S, T = 2, 4, 8
    inp = jax.random.normal(k_x, (B, S, T, K), dtype=jnp.float32)

    out = matmul_mean(inp, weights)
    out = jax.block_until_ready(out)

    # Reference (plain JAX) for sanity
    ref = jnp.mean(jnp.einsum("bstk,kn->bstn", inp, weights), axis=2).reshape(-1, 4)
    assert out.shape == (B * S, 4)
    assert jnp.allclose(out, ref, atol=1e-4, rtol=1e-4)

    print("KERNEL_OK")
</pallas_src>

<mosaic_0001>
module attributes {stable_mosaic.version = 11 : i64} {
  func.func @_matmul_mean_kernel(%arg0: i32, %arg1: memref<8x5120xf32, #tpu.memory_space<vmem>>, %arg2: memref<5120x4xf32, #tpu.memory_space<vmem>>, %arg3: memref<8x4xf32, #tpu.memory_space<vmem>>) attributes {dimension_semantics = [#tpu.dimension_semantics<parallel>], iteration_bounds = array<i64: 1>, scalar_prefetch = 0 : i64, scratch_operands = 0 : i64, tpu.core_type = #tpu.core_type<tc>, window_params = [{transform_indices = @transform_0, window_bounds = array<i64: 8, 5120>}, {pipeline_mode = #tpu.pipeline_mode<synchronous>, transform_indices = @transform_1, window_bounds = array<i64: 5120, 4>}, {transform_indices = @transform_2, window_bounds = array<i64: 8, 4>}]} {
    %c0 = arith.constant 0 : index
    %c0_0 = arith.constant 0 : index
    %0 = vector.load %arg1[%c0, %c0_0] : memref<8x5120xf32, #tpu.memory_space<vmem>>, vector<8x5120xf32>
    %c0_1 = arith.constant 0 : index
    %c0_2 = arith.constant 0 : index
    %1 = vector.load %arg2[%c0_1, %c0_2] : memref<5120x4xf32, #tpu.memory_space<vmem>>, vector<5120x4xf32>
    %cst = arith.constant dense<0.000000e+00> : vector<8x4xf32>
    %2 = tpu.matmul %0, %1, %cst {dimension_numbers = #tpu.dot_dimension_numbers<[1], [0], [0], [1], [0, 0, 1, 1], [], []>} : vector<8x5120xf32>, vector<5120x4xf32>, vector<8x4xf32> -> vector<8x4xf32>
    %c0_3 = arith.constant 0 : index
    %c0_4 = arith.constant 0 : index
    %3 = vector.load %arg3[%c0_3, %c0_4] : memref<8x4xf32, #tpu.memory_space<vmem>>, vector<8x4xf32>
    tpu.vector_store %arg3[%c0_3, %c0_4], %2 {strides = array<i32>} : memref<8x4xf32, #tpu.memory_space<vmem>>, vector<8x4xf32>,
    return
  }
  func.func @transform_0(%arg0: i32) -> (i32, i32) {
    %c0_i32 = arith.constant 0 : i32
    %c0_i32_0 = arith.constant 0 : i32
    return %arg0, %c0_i32 : i32, i32
  }
  func.func @transform_1(%arg0: i32) -> (i32, i32) {
    %c0_i32 = arith.constant 0 : i32
    %c0_i32_0 = arith.constant 0 : i32
    %c0_i32_1 = arith.constant 0 : i32
    return %c0_i32, %c0_i32_0 : i32, i32
  }
  func.func @transform_2(%arg0: i32) -> (i32, i32) {
    %c0_i32 = arith.constant 0 : i32
    %c0_i32_0 = arith.constant 0 : i32
    return %arg0, %c0_i32 : i32, i32
  }
}

</mosaic_0001>

<llo_original>
// kernel: tpu_custom_call.1
$region0: #{tpu_custom_call.1}
  #allocation0 [shape = 'u32[]', space=smem, size = 0x4, offset = 0x4, fixed_abs, tag = 'smem constant byte address 0x4 - core index']
  #allocation1 [shape = 'u32[72,128]{1,0:T(1,128)}', space=vmem, size = 0x9000, scoped, tag = 'internal scratch']
  %s0 = inlined_call_operand.vmem [shape: f32[8,5120], index: 0, kind: input, shape index: {}]
  %s1 = inlined_call_operand.vmem [shape: f32[5120,4], index: 1, kind: input, shape index: {}]
  %s2 = inlined_call_operand.vmem [shape: f32[8,4], index: 2, kind: output, shape index: {}]
  %s3 = sld [smem:[#allocation0]]
  $region18: #{tpu_custom_call.1} parent=0
    _
  %s5 = ssub.s32 1, %s3
  %s6 = scalar_select 0, %s5, %s3
  // Predicated region
  $region2: #{tpu_custom_call.1} parent=0 // pred_check
    _
  $region3: #{tpu_custom_call.1} parent=0 // pred_check_branch
    %8 = sbr.rel (0) target = $region5
  $region4: #{tpu_custom_call.1} parent=0 // pred_region
    _
  $region5: #{tpu_custom_call.1} parent=0 // pred_fallthru
    _
  // Predicated region
  $region6: #{tpu_custom_call.1} parent=0 // pred_check
    _
  $region7: #{tpu_custom_call.1} parent=0 // pred_check_branch
    %10 = sbr.rel (0) target = $region9
  $region8: #{tpu_custom_call.1} parent=0 // pred_region
    _
  $region9: #{tpu_custom_call.1} parent=0 // pred_fallthru
    _
  %v11 = vld [vmem:[%s0] sm:$0xff]
  %v12 = vld [vmem:[%s0 + $0x8] sm:$0xff]
  %v13 = vld [vmem:[%s0 + $0x10] sm:$0xff]
  %v14 = vld [vmem:[%s0 + $0x18] sm:$0xff]
  %v15 = vld [vmem:[%s0 + $0x20] sm:$0xff]
  %v16 = vld [vmem:[%s0 + $0x28] sm:$0xff]
  %v17 = vld [vmem:[%s0 + $0x30] sm:$0xff]
  %v18 = vld [vmem:[%s0 + $0x38] sm:$0xff]
  %v19 = vld [vmem:[%s0 + $0x40] sm:$0xff]
  %v20 = vld [vmem:[%s0 + $0x48] sm:$0xff]
  %v21 = vld [vmem:[%s0 + $0x50] sm:$0xff]
  %v22 = vld [vmem:[%s0 + $0x58] sm:$0xff]
  %v23 = vld [vmem:[%s0 + $0x60] sm:$0xff]
  %v24 = vld [vmem:[%s0 + $0x68] sm:$0xff]
  %v25 = vld [vmem:[%s0 + $0x70] sm:$0xff]
  %v26 = vld [vmem:[%s0 + $0x78] sm:$0xff]
  %v27 = vld [vmem:[%s0 + $0x80] sm:$0xff]
  %v28 = vld [vmem:[%s0 + $0x88] sm:$0xff]
  %v29 = vld [vmem:[%s0 + $0x90] sm:$0xff]
  %v30 = vld [vmem:[%s0 + $0x98] sm:$0xff]
  %v31 = vld [vmem:[%s0 + $0xa0] sm:$0xff]
  %v32 = vld [vmem:[%s0 + $0xa8] sm:$0xff]
  %v33 = vld [vmem:[%s0 + $0xb0] sm:$0xff]
  %v34 = vld [vmem:[%s0 + $0xb8] sm:$0xff]
  %v35 = vld [vmem:[%s0 + $0xc0] sm:$0xff]
  %v36 = vld [vmem:[%s0 + $0xc8] sm:$0xff]
  %v37 = vld [vmem:[%s0 + $0xd0] sm:$0xff]
  %v38 = vld [vmem:[%s0 + $0xd8] sm:$0xff]
  %v39 = vld [vmem:[%s0 + $0xe0] sm:$0xff]
  %v40 = vld [vmem:[%s0 + $0xe8] sm:$0xff]
  %v41 = vld [vmem:[%s0 + $0xf0] sm:$0xff]
  %v42 = vld [vmem:[%s0 + $0xf8] sm:$0xff]
  %v43 = vld [vmem:[%s0 + $0x100] sm:$0xff]
  %v44 = vld [vmem:[%s0 + $0x108] sm:$0xff]
  %v45 = vld [vmem:[%s0 + $0x110] sm:$0xff]
  %v46 = vld [vmem:[%s0 + $0x118] sm:$0xff]
  %v47 = vld [vmem:[%s0 + $0x120] sm:$0xff]
  %v48 = vld [vmem:[%s0 + $0x128] sm:$0xff]
  %v49 = vld [vmem:[%s0 + $0x130] sm:$0xff]
  %v50 = vld [vmem:[%s0 + $0x138] sm:$0xff]
  %v51 = vld [vmem:[%s1] sm:$0xff]
  %v52 = vld [vmem:[%s1 + $0x8] sm:$0xff]
  %v53 = vld [vmem:[%s1 + $0x10] sm:$0xff]
  %v54 = vld [vmem:[%s1 + $0x18] sm:$0xff]
  %v55 = vld [vmem:[%s1 + $0x20] sm:$0xff]
  %v56 = vld [vmem:[%s1 + $0x28] sm:$0xff]
  %v57 = vld [vmem:[%s1 + $0x30] sm:$0xff]
  %v58 = vld [vmem:[%s1 + $0x38] sm:$0xff]
  %v59 = vld [vmem:[%s1 + $0x40] sm:$0xff]
  %v60 = vld [vmem:[%s1 + $0x48] sm:$0xff]
  %v61 = vld [vmem:[%s1 + $0x50] sm:$0xff]
  %v62 = vld [vmem:[%s1 + $0x58] sm:$0xff]
  %v63 = vld [vmem:[%s1 + $0x60] sm:$0xff]
  %v64 = vld [vmem:[%s1 + $0x68] sm:$0xff]
  %v65 = vld [vmem:[%s1 + $0x70] sm:$0xff]
  %v66 = vld [vmem:[%s1 + $0x78] sm:$0xff]
  %v67 = vld [vmem:[%s1 + $0x80] sm:$0xff]
  %v68 = vld [vmem:[%s1 + $0x88] sm:$0xff]
  %v69 = vld [vmem:[%s1 + $0x90] sm:$0xff]
  %v70 = vld [vmem:[%s1 + $0x98] sm:$0xff]
  %v71 = vld [vmem:[%s1 + $0xa0] sm:$0xff]
  %v72 = vld [vmem:[%s1 + $0xa8] sm:$0xff]
  %v73 = vld [vmem:[%s1 + $0xb0] sm:$0xff]
  %v74 = vld [vmem:[%s1 + $0xb8] sm:$0xff]
  %v75 = vld [vmem:[%s1 + $0xc0] sm:$0xff]
  %v76 = vld [vmem:[%s1 + $0xc8] sm:$0xff]
  %v77 = vld [vmem:[%s1 + $0xd0] sm:$0xff]
  %v78 = vld [vmem:[%s1 + $0xd8] sm:$0xff]
  %v79 = vld [vmem:[%s1 + $0xe0] sm:$0xff]
  %v80 = vld [vmem:[%s1 + $0xe8] sm:$0xff]
  %v81 = vld [vmem:[%s1 + $0xf0] sm:$0xff]
  %v82 = vld [vmem:[%s1 + $0xf8] sm:$0xff]
  %v83 = vld [vmem:[%s1 + $0x100] sm:$0xff]
  %v84 = vld [vmem:[%s1 + $0x108] sm:$0xff]
  %v85 = vld [vmem:[%s1 + $0x110] sm:$0xff]
  %v86 = vld [vmem:[%s1 + $0x118] sm:$0xff]
  %v87 = vld [vmem:[%s1 + $0x120] sm:$0xff]
  %v88 = vld [vmem:[%s1 + $0x128] sm:$0xff]
  %v89 = vld [vmem:[%s1 + $0x130] sm:$0xff]
  %v90 = vld [vmem:[%s1 + $0x138] sm:$0xff]
  %v91 = vld [vmem:[%s1 + $0x140] sm:$0xff]
  %v92 = vld [vmem:[%s1 + $0x148] sm:$0xff]
  %v93 = vld [vmem:[%s1 + $0x150] sm:$0xff]
  %v94 = vld [vmem:[%s1 + $0x158] sm:$0xff]
  %v95 = vld [vmem:[%s1 + $0x160] sm:$0xff]
  %v96 = vld [vmem:[%s1 + $0x168] sm:$0xff]
  %v97 = vld [vmem:[%s1 + $0x170] sm:$0xff]
  %v98 = vld [vmem:[%s1 + $0x178] sm:$0xff]
  %v99 = vld [vmem:[%s1 + $0x180] sm:$0xff]
  %v100 = vld [vmem:[%s1 + $0x188] sm:$0xff]
  %v101 = vld [vmem:[%s1 + $0x190] sm:$0xff]
  %v102 = vld [vmem:[%s1 + $0x198] sm:$0xff]
  %v103 = vld [vmem:[%s1 + $0x1a0] sm:$0xff]
  %v104 = vld [vmem:[%s1 + $0x1a8] sm:$0xff]
  %v105 = vld [vmem:[%s1 + $0x1b0] sm:$0xff]
  %v106 = vld [vmem:[%s1 + $0x1b8] sm:$0xff]
  %v107 = vld [vmem:[%s1 + $0x1c0] sm:$0xff]
  %v108 = vld [vmem:[%s1 + $0x1c8] sm:$0xff]
  %v109 = vld [vmem:[%s1 + $0x1d0] sm:$0xff]
  %v110 = vld [vmem:[%s1 + $0x1d8] sm:$0xff]
  %v111 = vld [vmem:[%s1 + $0x1e0] sm:$0xff]
  %v112 = vld [vmem:[%s1 + $0x1e8] sm:$0xff]
  %v113 = vld [vmem:[%s1 + $0x1f0] sm:$0xff]
  %v114 = vld [vmem:[%s1 + $0x1f8] sm:$0xff]
  %v115 = vld [vmem:[%s1 + $0x200] sm:$0xff]
  %v116 = vld [vmem:[%s1 + $0x208] sm:$0xff]
  %v117 = vld [vmem:[%s1 + $0x210] sm:$0xff]
  %v118 = vld [vmem:[%s1 + $0x218] sm:$0xff]
  %v119 = vld [vmem:[%s1 + $0x220] sm:$0xff]
  %v120 = vld [vmem:[%s1 + $0x228] sm:$0xff]
  %v121 = vld [vmem:[%s1 + $0x230] sm:$0xff]
  %v122 = vld [vmem:[%s1 + $0x238] sm:$0xff]
  %v123 = vld [vmem:[%s1 + $0x240] sm:$0xff]
  %v124 = vld [vmem:[%s1 + $0x248] sm:$0xff]
  %v125 = vld [vmem:[%s1 + $0x250] sm:$0xff]
  %v126 = vld [vmem:[%s1 + $0x258] sm:$0xff]
  %v127 = vld [vmem:[%s1 + $0x260] sm:$0xff]
  %v128 = vld [vmem:[%s1 + $0x268] sm:$0xff]
  %v129 = vld [vmem:[%s1 + $0x270] sm:$0xff]
  %v130 = vld [vmem:[%s1 + $0x278] sm:$0xff]
  %v131 = vld [vmem:[%s1 + $0x280] sm:$0xff]
  %v132 = vld [vmem:[%s1 + $0x288] sm:$0xff]
  %v133 = vld [vmem:[%s1 + $0x290] sm:$0xff]
  %v134 = vld [vmem:[%s1 + $0x298] sm:$0xff]
  %v135 = vld [vmem:[%s1 + $0x2a0] sm:$0xff]
  %v136 = vld [vmem:[%s1 + $0x2a8] sm:$0xff]
  %v137 = vld [vmem:[%s1 + $0x2b0] sm:$0xff]
  %v138 = vld [vmem:[%s1 + $0x2b8] sm:$0xff]
  %v139 = vld [vmem:[%s1 + $0x2c0] sm:$0xff]
  %v140 = vld [vmem:[%s1 + $0x2c8] sm:$0xff]
  %v141 = vld [vmem:[%s1 + $0x2d0] sm:$0xff]
  %v142 = vld [vmem:[%s1 + $0x2d8] sm:$0xff]
  %v143 = vld [vmem:[%s1 + $0x2e0] sm:$0xff]
  %v144 = vld [vmem:[%s1 + $0x2e8] sm:$0xff]
  %v145 = vld [vmem:[%s1 + $0x2f0] sm:$0xff]
  %v146 = vld [vmem:[%s1 + $0x2f8] sm:$0xff]
  %v147 = vld [vmem:[%s1 + $0x300] sm:$0xff]
  %v148 = vld [vmem:[%s1 + $0x308] sm:$0xff]
  %v149 = vld [vmem:[%s1 + $0x310] sm:$0xff]
  %v150 = vld [vmem:[%s1 + $0x318] sm:$0xff]
  %v151 = vld [vmem:[%s1 + $0x320] sm:$0xff]
  %v152 = vld [vmem:[%s1 + $0x328] sm:$0xff]
  %v153 = vld [vmem:[%s1 + $0x330] sm:$0xff]
  %v154 = vld [vmem:[%s1 + $0x338] sm:$0xff]
  %v155 = vld [vmem:[%s1 + $0x340] sm:$0xff]
  %v156 = vld [vmem:[%s1 + $0x348] sm:$0xff]
  %v157 = vld [vmem:[%s1 + $0x350] sm:$0xff]
  %v158 = vld [vmem:[%s1 + $0x358] sm:$0xff]
  %v159 = vld [vmem:[%s1 + $0x360] sm:$0xff]
  %v160 = vld [vmem:[%s1 + $0x368] sm:$0xff]
  %v161 = vld [vmem:[%s1 + $0x370] sm:$0xff]
  %v162 = vld [vmem:[%s1 + $0x378] sm:$0xff]
  %v163 = vld [vmem:[%s1 + $0x380] sm:$0xff]
  %v164 = vld [vmem:[%s1 + $0x388] sm:$0xff]
  %v165 = vld [vmem:[%s1 + $0x390] sm:$0xff]
  %v166 = vld [vmem:[%s1 + $0x398] sm:$0xff]
  %v167 = vld [vmem:[%s1 + $0x3a0] sm:$0xff]
  %v168 = vld [vmem:[%s1 + $0x3a8] sm:$0xff]
  %v169 = vld [vmem:[%s1 + $0x3b0] sm:$0xff]
  %v170 = vld [vmem:[%s1 + $0x3b8] sm:$0xff]
  %v171 = vld [vmem:[%s1 + $0x3c0] sm:$0xff]
  %v172 = vld [vmem:[%s1 + $0x3c8] sm:$0xff]
  %v173 = vld [vmem:[%s1 + $0x3d0] sm:$0xff]
  %v174 = vld [vmem:[%s1 + $0x3d8] sm:$0xff]
  %v175 = vld [vmem:[%s1 + $0x3e0] sm:$0xff]
  %v176 = vld [vmem:[%s1 + $0x3e8] sm:$0xff]
  %v177 = vld [vmem:[%s1 + $0x3f0] sm:$0xff]
  %v178 = vld [vmem:[%s1 + $0x3f8] sm:$0xff]
  %v179 = vld [vmem:[%s1 + $0x400] sm:$0xff]
  %v180 = vld [vmem:[%s1 + $0x408] sm:$0xff]
  %v181 = vld [vmem:[%s1 + $0x410] sm:$0xff]
  %v182 = vld [vmem:[%s1 + $0x418] sm:$0xff]
  %v183 = vld [vmem:[%s1 + $0x420] sm:$0xff]
  %v184 = vld [vmem:[%s1 + $0x428] sm:$0xff]
  %v185 = vld [vmem:[%s1 + $0x430] sm:$0xff]
  %v186 = vld [vmem:[%s1 + $0x438] sm:$0xff]
  %v187 = vld [vmem:[%s1 + $0x440] sm:$0xff]
  %v188 = vld [vmem:[%s1 + $0x448] sm:$0xff]
  %v189 = vld [vmem:[%s1 + $0x450] sm:$0xff]
  %v190 = vld [vmem:[%s1 + $0x458] sm:$0xff]
  %v191 = vld [vmem:[%s1 + $0x460] sm:$0xff]
  %v192 = vld [vmem:[%s1 + $0x468] sm:$0xff]
  %v193 = vld [vmem:[%s1 + $0x470] sm:$0xff]
  %v194 = vld [vmem:[%s1 + $0x478] sm:$0xff]
  %v195 = vld [vmem:[%s1 + $0x480] sm:$0xff]
  %v196 = vld [vmem:[%s1 + $0x488] sm:$0xff]
  %v197 = vld [vmem:[%s1 + $0x490] sm:$0xff]
  %v198 = vld [vmem:[%s1 + $0x498] sm:$0xff]
  %v199 = vld [vmem:[%s1 + $0x4a0] sm:$0xff]
  %v200 = vld [vmem:[%s1 + $0x4a8] sm:$0xff]
  %v201 = vld [vmem:[%s1 + $0x4b0] sm:$0xff]
  %v202 = vld [vmem:[%s1 + $0x4b8] sm:$0xff]
  %v203 = vld [vmem:[%s1 + $0x4c0] sm:$0xff]
  %v204 = vld [vmem:[%s1 + $0x4c8] sm:$0xff]
  %v205 = vld [vmem:[%s1 + $0x4d0] sm:$0xff]
  %v206 = vld [vmem:[%s1 + $0x4d8] sm:$0xff]
  %v207 = vld [vmem:[%s1 + $0x4e0] sm:$0xff]
  %v208 = vld [vmem:[%s1 + $0x4e8] sm:$0xff]
  %v209 = vld [vmem:[%s1 + $0x4f0] sm:$0xff]
  %v210 = vld [vmem:[%s1 + $0x4f8] sm:$0xff]
  %v211 = vld [vmem:[%s1 + $0x500] sm:$0xff]
  %v212 = vld [vmem:[%s1 + $0x508] sm:$0xff]
  %v213 = vld [vmem:[%s1 + $0x510] sm:$0xff]
  %v214 = vld [vmem:[%s1 + $0x518] sm:$0xff]
  %v215 = vld [vmem:[%s1 + $0x520] sm:$0xff]
  %v216 = vld [vmem:[%s1 + $0x528] sm:$0xff]
  %v217 = vld [vmem:[%s1 + $0x530] sm:$0xff]
  %v218 = vld [vmem:[%s1 + $0x538] sm:$0xff]
  %v219 = vld [vmem:[%s1 + $0x540] sm:$0xff]
  %v220 = vld [vmem:[%s1 + $0x548] sm:$0xff]
  %v221 = vld [vmem:[%s1 + $0x550] sm:$0xff]
  %v222 = vld [vmem:[%s1 + $0x558] sm:$0xff]
  %v223 = vld [vmem:[%s1 + $0x560] sm:$0xff]
  %v224 = vld [vmem:[%s1 + $0x568] sm:$0xff]
  %v225 = vld [vmem:[%s1 + $0x570] sm:$0xff]
  %v226 = vld [vmem:[%s1 + $0x578] sm:$0xff]
  %v227 = vld [vmem:[%s1 + $0x580] sm:$0xff]
  %v228 = vld [vmem:[%s1 + $0x588] sm:$0xff]
  %v229 = vld [vmem:[%s1 + $0x590] sm:$0xff]
  %v230 = vld [vmem:[%s1 + $0x598] sm:$0xff]
  %v231 = vld [vmem:[%s1 + $0x5a0] sm:$0xff]
  %v232 = vld [vmem:[%s1 + $0x5a8] sm:$0xff]
  %v233 = vld [vmem:[%s1 + $0x5b0] sm:$0xff]
  %v234 = vld [vmem:[%s1 + $0x5b8] sm:$0xff]
  %v235 = vld [vmem:[%s1 + $0x5c0] sm:$0xff]
  %v236 = vld [vmem:[%s1 + $0x5c8] sm:$0xff]
  %v237 = vld [vmem:[%s1 + $0x5d0] sm:$0xff]
  %v238 = vld [vmem:[%s1 + $0x5d8] sm:$0xff]
  %v239 = vld [vmem:[%s1 + $0x5e0] sm:$0xff]
  %v240 = vld [vmem:[%s1 + $0x5e8] sm:$0xff]
  %v241 = vld [vmem:[%s1 + $0x5f0] sm:$0xff]
  %v242 = vld [vmem:[%s1 + $0x5f8] sm:$0xff]
  %v243 = vld [vmem:[%s1 + $0x600] sm:$0xff]
  %v244 = vld [vmem:[%s1 + $0x608] sm:$0xff]
  %v245 = vld [vmem:[%s1 + $0x610] sm:$0xff]
  %v246 = vld [vmem:[%s1 + $0x618] sm:$0xff]
  %v247 = vld [vmem:[%s1 + $0x620] sm:$0xff]
  %v248 = vld [vmem:[%s1 + $0x628] sm:$0xff]
  %v249 = vld [vmem:[%s1 + $0x630] sm:$0xff]
  %v250 = vld [vmem:[%s1 + $0x638] sm:$0xff]
  %v251 = vld [vmem:[%s1 + $0x640] sm:$0xff]
  %v252 = vld [vmem:[%s1 + $0x648] sm:$0xff]
  %v253 = vld [vmem:[%s1 + $0x650] sm:$0xff]
  %v254 = vld [vmem:[%s1 + $0x658] sm:$0xff]
  %v255 = vld [vmem:[%s1 + $0x660] sm:$0xff]
  %v256 = vld [vmem:[%s1 + $0x668] sm:$0xff]
  %v257 = vld [vmem:[%s1 + $0x670] sm:$0xff]
  %v258 = vld [vmem:[%s1 + $0x678] sm:$0xff]
  %v259 = vld [vmem:[%s1 + $0x680] sm:$0xff]
  %v260 = vld [vmem:[%s1 + $0x688] sm:$0xff]
  %v261 = vld [vmem:[%s1 + $0x690] sm:$0xff]
  %v262 = vld [vmem:[%s1 + $0x698] sm:$0xff]
  %v263 = vld [vmem:[%s1 + $0x6a0] sm:$0xff]
  %v264 = vld [vmem:[%s1 + $0x6a8] sm:$0xff]
  %v265 = vld [vmem:[%s1 + $0x6b0] sm:$0xff]
  %v266 = vld [vmem:[%s1 + $0x6b8] sm:$0xff]
  %v267 = vld [vmem:[%s1 + $0x6c0] sm:$0xff]
  %v268 = vld [vmem:[%s1 + $0x6c8] sm:$0xff]
  %v269 = vld [vmem:[%s1 + $0x6d0] sm:$0xff]
  %v270 = vld [vmem:[%s1 + $0x6d8] sm:$0xff]
  %v271 = vld [vmem:[%s1 + $0x6e0] sm:$0xff]
  %v272 = vld [vmem:[%s1 + $0x6e8] sm:$0xff]
  %v273 = vld [vmem:[%s1 + $0x6f0] sm:$0xff]
  %v274 = vld [vmem:[%s1 + $0x6f8] sm:$0xff]
  %v275 = vld [vmem:[%s1 + $0x700] sm:$0xff]
  %v276 = vld [vmem:[%s1 + $0x708] sm:$0xff]
  %v277 = vld [vmem:[%s1 + $0x710] sm:$0xff]
  %v278 = vld [vmem:[%s1 + $0x718] sm:$0xff]
  %v279 = vld [vmem:[%s1 + $0x720] sm:$0xff]
  %v280 = vld [vmem:[%s1 + $0x728] sm:$0xff]
  %v281 = vld [vmem:[%s1 + $0x730] sm:$0xff]
  %v282 = vld [vmem:[%s1 + $0x738] sm:$0xff]
  %v283 = vld [vmem:[%s1 + $0x740] sm:$0xff]
  %v284 = vld [vmem:[%s1 + $0x748] sm:$0xff]
  %v285 = vld [vmem:[%s1 + $0x750] sm:$0xff]
  %v286 = vld [vmem:[%s1 + $0x758] sm:$0xff]
  %v287 = vld [vmem:[%s1 + $0x760] sm:$0xff]
  %v288 = vld [vmem:[%s1 + $0x768] sm:$0xff]
  %v289 = vld [vmem:[%s1 + $0x770] sm:$0xff]
  %v290 = vld [vmem:[%s1 + $0x778] sm:$0xff]
  %v291 = vld [vmem:[%s1 + $0x780] sm:$0xff]
  %v292 = vld [vmem:[%s1 + $0x788] sm:$0xff]
  %v293 = vld [vmem:[%s1 + $0x790] sm:$0xff]
  %v294 = vld [vmem:[%s1 + $0x798] sm:$0xff]
  %v295 = vld [vmem:[%s1 + $0x7a0] sm:$0xff]
  %v296 = vld [vmem:[%s1 + $0x7a8] sm:$0xff]
  %v297 = vld [vmem:[%s1 + $0x7b0] sm:$0xff]
  %v298 = vld [vmem:[%s1 + $0x7b8] sm:$0xff]
  %v299 = vld [vmem:[%s1 + $0x7c0] sm:$0xff]
  %v300 = vld [vmem:[%s1 + $0x7c8] sm:$0xff]
  %v301 = vld [vmem:[%s1 + $0x7d0] sm:$0xff]
  %v302 = vld [vmem:[%s1 + $0x7d8] sm:$0xff]
  %v303 = vld [vmem:[%s1 + $0x7e0] sm:$0xff]
  %v304 = vld [vmem:[%s1 + $0x7e8] sm:$0xff]
  %v305 = vld [vmem:[%s1 + $0x7f0] sm:$0xff]
  %v306 = vld [vmem:[%s1 + $0x7f8] sm:$0xff]
  %v307 = vld [vmem:[%s1 + $0x800] sm:$0xff]
  %v308 = vld [vmem:[%s1 + $0x808] sm:$0xff]
  %v309 = vld [vmem:[%s1 + $0x810] sm:$0xff]
  %v310 = vld [vmem:[%s1 + $0x818] sm:$0xff]
  %v311 = vld [vmem:[%s1 + $0x820] sm:$0xff]
  %v312 = vld [vmem:[%s1 + $0x828] sm:$0xff]
  %v313 = vld [vmem:[%s1 + $0x830] sm:$0xff]
  %v314 = vld [vmem:[%s1 + $0x838] sm:$0xff]
  %v315 = vld [vmem:[%s1 + $0x840] sm:$0xff]
  %v316 = vld [vmem:[%s1 + $0x848] sm:$0xff]
  %v317 = vld [vmem:[%s1 + $0x850] sm:$0xff]
  %v318 = vld [vmem:[%s1 + $0x858] sm:$0xff]
  %v319 = vld [vmem:[%s1 + $0x860] sm:$0xff]
  %v320 = vld [vmem:[%s1 + $0x868] sm:$0xff]
  %v321 = vld [vmem:[%s1 + $0x870] sm:$0xff]
  %v322 = vld [vmem:[%s1 + $0x878] sm:$0xff]
  %v323 = vld [vmem:[%s1 + $0x880] sm:$0xff]
  %v324 = vld [vmem:[%s1 + $0x888] sm:$0xff]
  %v325 = vld [vmem:[%s1 + $0x890] sm:$0xff]
  %v326 = vld [vmem:[%s1 + $0x898] sm:$0xff]
  %v327 = vld [vmem:[%s1 + $0x8a0] sm:$0xff]
  %v328 = vld [vmem:[%s1 + $0x8a8] sm:$0xff]
  %v329 = vld [vmem:[%s1 + $0x8b0] sm:$0xff]
  %v330 = vld [vmem:[%s1 + $0x8b8] sm:$0xff]
  %v331 = vld [vmem:[%s1 + $0x8c0] sm:$0xff]
  %v332 = vld [vmem:[%s1 + $0x8c8] sm:$0xff]
  %v333 = vld [vmem:[%s1 + $0x8d0] sm:$0xff]
  %v334 = vld [vmem:[%s1 + $0x8d8] sm:$0xff]
  %v335 = vld [vmem:[%s1 + $0x8e0] sm:$0xff]
  %v336 = vld [vmem:[%s1 + $0x8e8] sm:$0xff]
  %v337 = vld [vmem:[%s1 + $0x8f0] sm:$0xff]
  %v338 = vld [vmem:[%s1 + $0x8f8] sm:$0xff]
  %v339 = vld [vmem:[%s1 + $0x900] sm:$0xff]
  %v340 = vld [vmem:[%s1 + $0x908] sm:$0xff]
  %v341 = vld [vmem:[%s1 + $0x910] sm:$0xff]
  %v342 = vld [vmem:[%s1 + $0x918] sm:$0xff]
  %v343 = vld [vmem:[%s1 + $0x920] sm:$0xff]
  %v344 = vld [vmem:[%s1 + $0x928] sm:$0xff]
  %v345 = vld [vmem:[%s1 + $0x930] sm:$0xff]
  %v346 = vld [vmem:[%s1 + $0x938] sm:$0xff]
  %v347 = vld [vmem:[%s1 + $0x940] sm:$0xff]
  %v348 = vld [vmem:[%s1 + $0x948] sm:$0xff]
  %v349 = vld [vmem:[%s1 + $0x950] sm:$0xff]
  %v350 = vld [vmem:[%s1 + $0x958] sm:$0xff]
  %v351 = vld [vmem:[%s1 + $0x960] sm:$0xff]
  %v352 = vld [vmem:[%s1 + $0x968] sm:$0xff]
  %v353 = vld [vmem:[%s1 + $0x970] sm:$0xff]
  %v354 = vld [vmem:[%s1 + $0x978] sm:$0xff]
  %v355 = vld [vmem:[%s1 + $0x980] sm:$0xff]
  %v356 = vld [vmem:[%s1 + $0x988] sm:$0xff]
  %v357 = vld [vmem:[%s1 + $0x990] sm:$0xff]
  %v358 = vld [vmem:[%s1 + $0x998] sm:$0xff]
  %v359 = vld [vmem:[%s1 + $0x9a0] sm:$0xff]
  %v360 = vld [vmem:[%s1 + $0x9a8] sm:$0xff]
  %v361 = vld [vmem:[%s1 + $0x9b0] sm:$0xff]
  %v362 = vld [vmem:[%s1 + $0x9b8] sm:$0xff]
  %v363 = vld [vmem:[%s1 + $0x9c0] sm:$0xff]
  %v364 = vld [vmem:[%s1 + $0x9c8] sm:$0xff]
  %v365 = vld [vmem:[%s1 + $0x9d0] sm:$0xff]
  %v366 = vld [vmem:[%s1 + $0x9d8] sm:$0xff]
  %v367 = vld [vmem:[%s1 + $0x9e0] sm:$0xff]
  %v368 = vld [vmem:[%s1 + $0x9e8] sm:$0xff]
  %v369 = vld [vmem:[%s1 + $0x9f0] sm:$0xff]
  %v370 = vld [vmem:[%s1 + $0x9f8] sm:$0xff]
  %v371 = vld [vmem:[%s1 + $0xa00] sm:$0xff]
  %v372 = vld [vmem:[%s1 + $0xa08] sm:$0xff]
  %v373 = vld [vmem:[%s1 + $0xa10] sm:$0xff]
  %v374 = vld [vmem:[%s1 + $0xa18] sm:$0xff]
  %v375 = vld [vmem:[%s1 + $0xa20] sm:$0xff]
  %v376 = vld [vmem:[%s1 + $0xa28] sm:$0xff]
  %v377 = vld [vmem:[%s1 + $0xa30] sm:$0xff]
  %v378 = vld [vmem:[%s1 + $0xa38] sm:$0xff]
  %v379 = vld [vmem:[%s1 + $0xa40] sm:$0xff]
  %v380 = vld [vmem:[%s1 + $0xa48] sm:$0xff]
  %v381 = vld [vmem:[%s1 + $0xa50] sm:$0xff]
  %v382 = vld [vmem:[%s1 + $0xa58] sm:$0xff]
  %v383 = vld [vmem:[%s1 + $0xa60] sm:$0xff]
  %v384 = vld [vmem:[%s1 + $0xa68] sm:$0xff]
  %v385 = vld [vmem:[%s1 + $0xa70] sm:$0xff]
  %v386 = vld [vmem:[%s1 + $0xa78] sm:$0xff]
  %v387 = vld [vmem:[%s1 + $0xa80] sm:$0xff]
  %v388 = vld [vmem:[%s1 + $0xa88] sm:$0xff]
  %v389 = vld [vmem:[%s1 + $0xa90] sm:$0xff]
  %v390 = vld [vmem:[%s1 + $0xa98] sm:$0xff]
  %v391 = vld [vmem:[%s1 + $0xaa0] sm:$0xff]
  %v392 = vld [vmem:[%s1 + $0xaa8] sm:$0xff]
  %v393 = vld [vmem:[%s1 + $0xab0] sm:$0xff]
  %v394 = vld [vmem:[%s1 + $0xab8] sm:$0xff]
  %v395 = vld [vmem:[%s1 + $0xac0] sm:$0xff]
  %v396 = vld [vmem:[%s1 + $0xac8] sm:$0xff]
  %v397 = vld [vmem:[%s1 + $0xad0] sm:$0xff]
  %v398 = vld [vmem:[%s1 + $0xad8] sm:$0xff]
  %v399 = vld [vmem:[%s1 + $0xae0] sm:$0xff]
  %v400 = vld [vmem:[%s1 + $0xae8] sm:$0xff]
  %v401 = vld [vmem:[%s1 + $0xaf0] sm:$0xff]
  %v402 = vld [vmem:[%s1 + $0xaf8] sm:$0xff]
  %v403 = vld [vmem:[%s1 + $0xb00] sm:$0xff]
  %v404 = vld [vmem:[%s1 + $0xb08] sm:$0xff]
  %v405 = vld [vmem:[%s1 + $0xb10] sm:$0xff]
  %v406 = vld [vmem:[%s1 + $0xb18] sm:$0xff]
  %v407 = vld [vmem:[%s1 + $0xb20] sm:$0xff]
  %v408 = vld [vmem:[%s1 + $0xb28] sm:$0xff]
  %v409 = vld [vmem:[%s1 + $0xb30] sm:$0xff]
  %v410 = vld [vmem:[%s1 + $0xb38] sm:$0xff]
  %v411 = vld [vmem:[%s1 + $0xb40] sm:$0xff]
  %v412 = vld [vmem:[%s1 + $0xb48] sm:$0xff]
  %v413 = vld [vmem:[%s1 + $0xb50] sm:$0xff]
  %v414 = vld [vmem:[%s1 + $0xb58] sm:$0xff]
  %v415 = vld [vmem:[%s1 + $0xb60] sm:$0xff]
  %v416 = vld [vmem:[%s1 + $0xb68] sm:$0xff]
  %v417 = vld [vmem:[%s1 + $0xb70] sm:$0xff]
  %v418 = vld [vmem:[%s1 + $0xb78] sm:$0xff]
  %v419 = vld [vmem:[%s1 + $0xb80] sm:$0xff]
  %v420 = vld [vmem:[%s1 + $0xb88] sm:$0xff]
  %v421 = vld [vmem:[%s1 + $0xb90] sm:$0xff]
  %v422 = vld [vmem:[%s1 + $0xb98] sm:$0xff]
  %v423 = vld [vmem:[%s1 + $0xba0] sm:$0xff]
  %v424 = vld [vmem:[%s1 + $0xba8] sm:$0xff]
  %v425 = vld [vmem:[%s1 + $0xbb0] sm:$0xff]
  %v426 = vld [vmem:[%s1 + $0xbb8] sm:$0xff]
  %v427 = vld [vmem:[%s1 + $0xbc0] sm:$0xff]
  %v428 = vld [vmem:[%s1 + $0xbc8] sm:$0xff]
  %v429 = vld [vmem:[%s1 + $0xbd0] sm:$0xff]
  %v430 = vld [vmem:[%s1 + $0xbd8] sm:$0xff]
  %v431 = vld [vmem:[%s1 + $0xbe0] sm:$0xff]
  %v432 = vld [vmem:[%s1 + $0xbe8] sm:$0xff]
  %v433 = vld [vmem:[%s1 + $0xbf0] sm:$0xff]
  %v434 = vld [vmem:[%s1 + $0xbf8] sm:$0xff]
  %v435 = vld [vmem:[%s1 + $0xc00] sm:$0xff]
  %v436 = vld [vmem:[%s1 + $0xc08] sm:$0xff]
  %v437 = vld [vmem:[%s1 + $0xc10] sm:$0xff]
  %v438 = vld [vmem:[%s1 + $0xc18] sm:$0xff]
  %v439 = vld [vmem:[%s1 + $0xc20] sm:$0xff]
  %v440 = vld [vmem:[%s1 + $0xc28] sm:$0xff]
  %v441 = vld [vmem:[%s1 + $0xc30] sm:$0xff]
  %v442 = vld [vmem:[%s1 + $0xc38] sm:$0xff]
  %v443 = vld [vmem:[%s1 + $0xc40] sm:$0xff]
  %v444 = vld [vmem:[%s1 + $0xc48] sm:$0xff]
  %v445 = vld [vmem:[%s1 + $0xc50] sm:$0xff]
  %v446 = vld [vmem:[%s1 + $0xc58] sm:$0xff]
  %v447 = vld [vmem:[%s1 + $0xc60] sm:$0xff]
  %v448 = vld [vmem:[%s1 + $0xc68] sm:$0xff]
  %v449 = vld [vmem:[%s1 + $0xc70] sm:$0xff]
  %v450 = vld [vmem:[%s1 + $0xc78] sm:$0xff]
  %v451 = vld [vmem:[%s1 + $0xc80] sm:$0xff]
  %v452 = vld [vmem:[%s1 + $0xc88] sm:$0xff]
  %v453 = vld [vmem:[%s1 + $0xc90] sm:$0xff]
  %v454 = vld [vmem:[%s1 + $0xc98] sm:$0xff]
  %v455 = vld [vmem:[%s1 + $0xca0] sm:$0xff]
  %v456 = vld [vmem:[%s1 + $0xca8] sm:$0xff]
  %v457 = vld [vmem:[%s1 + $0xcb0] sm:$0xff]
  %v458 = vld [vmem:[%s1 + $0xcb8] sm:$0xff]
  %v459 = vld [vmem:[%s1 + $0xcc0] sm:$0xff]
  %v460 = vld [vmem:[%s1 + $0xcc8] sm:$0xff]
  %v461 = vld [vmem:[%s1 + $0xcd0] sm:$0xff]
  %v462 = vld [vmem:[%s1 + $0xcd8] sm:$0xff]
  %v463 = vld [vmem:[%s1 + $0xce0] sm:$0xff]
  %v464 = vld [vmem:[%s1 + $0xce8] sm:$0xff]
  %v465 = vld [vmem:[%s1 + $0xcf0] sm:$0xff]
  %v466 = vld [vmem:[%s1 + $0xcf8] sm:$0xff]
  %v467 = vld [vmem:[%s1 + $0xd00] sm:$0xff]
  %v468 = vld [vmem:[%s1 + $0xd08] sm:$0xff]
  %v469 = vld [vmem:[%s1 + $0xd10] sm:$0xff]
  %v470 = vld [vmem:[%s1 + $0xd18] sm:$0xff]
  %v471 = vld [vmem:[%s1 + $0xd20] sm:$0xff]
  %v472 = vld [vmem:[%s1 + $0xd28] sm:$0xff]
  %v473 = vld [vmem:[%s1 + $0xd30] sm:$0xff]
  %v474 = vld [vmem:[%s1 + $0xd38] sm:$0xff]
  %v475 = vld [vmem:[%s1 + $0xd40] sm:$0xff]
  %v476 = vld [vmem:[%s1 + $0xd48] sm:$0xff]
  %v477 = vld [vmem:[%s1 + $0xd50] sm:$0xff]
  %v478 = vld [vmem:[%s1 + $0xd58] sm:$0xff]
  %v479 = vld [vmem:[%s1 + $0xd60] sm:$0xff]
  %v480 = vld [vmem:[%s1 + $0xd68] sm:$0xff]
  %v481 = vld [vmem:[%s1 + $0xd70] sm:$0xff]
  %v482 = vld [vmem:[%s1 + $0xd78] sm:$0xff]
  %v483 = vld [vmem:[%s1 + $0xd80] sm:$0xff]
  %v484 = vld [vmem:[%s1 + $0xd88] sm:$0xff]
  %v485 = vld [vmem:[%s1 + $0xd90] sm:$0xff]
  %v486 = vld [vmem:[%s1 + $0xd98] sm:$0xff]
  %v487 = vld [vmem:[%s1 + $0xda0] sm:$0xff]
  %v488 = vld [vmem:[%s1 + $0xda8] sm:$0xff]
  %v489 = vld [vmem:[%s1 + $0xdb0] sm:$0xff]
  %v490 = vld [vmem:[%s1 + $0xdb8] sm:$0xff]
  %v491 = vld [vmem:[%s1 + $0xdc0] sm:$0xff]
  %v492 = vld [vmem:[%s1 + $0xdc8] sm:$0xff]
  %v493 = vld [vmem:[%s1 + $0xdd0] sm:$0xff]
  %v494 = vld [vmem:[%s1 + $0xdd8] sm:$0xff]
  %v495 = vld [vmem:[%s1 + $0xde0] sm:$0xff]
  %v496 = vld [vmem:[%s1 + $0xde8] sm:$0xff]
  %v497 = vld [vmem:[%s1 + $0xdf0] sm:$0xff]
  %v498 = vld [vmem:[%s1 + $0xdf8] sm:$0xff]
  %v499 = vld [vmem:[%s1 + $0xe00] sm:$0xff]
  %v500 = vld [vmem:[%s1 + $0xe08] sm:$0xff]
  %v501 = vld [vmem:[%s1 + $0xe10] sm:$0xff]
  %v502 = vld [vmem:[%s1 + $0xe18] sm:$0xff]
  %v503 = vld [vmem:[%s1 + $0xe20] sm:$0xff]
  %v504 = vld [vmem:[%s1 + $0xe28] sm:$0xff]
  %v505 = vld [vmem:[%s1 + $0xe30] sm:$0xff]
  %v506 = vld [vmem:[%s1 + $0xe38] sm:$0xff]
  %v507 = vld [vmem:[%s1 + $0xe40] sm:$0xff]
  %v508 = vld [vmem:[%s1 + $0xe48] sm:$0xff]
  %v509 = vld [vmem:[%s1 + $0xe50] sm:$0xff]
  %v510 = vld [vmem:[%s1 + $0xe58] sm:$0xff]
  %v511 = vld [vmem:[%s1 + $0xe60] sm:$0xff]
  %v512 = vld [vmem:[%s1 + $0xe68] sm:$0xff]
  %v513 = vld [vmem:[%s1 + $0xe70] sm:$0xff]
  %v514 = vld [vmem:[%s1 + $0xe78] sm:$0xff]
  %v515 = vld [vmem:[%s1 + $0xe80] sm:$0xff]
  %v516 = vld [vmem:[%s1 + $0xe88] sm:$0xff]
  %v517 = vld [vmem:[%s1 + $0xe90] sm:$0xff]
  %v518 = vld [vmem:[%s1 + $0xe98] sm:$0xff]
  %v519 = vld [vmem:[%s1 + $0xea0] sm:$0xff]
  %v520 = vld [vmem:[%s1 + $0xea8] sm:$0xff]
  %v521 = vld [vmem:[%s1 + $0xeb0] sm:$0xff]
  %v522 = vld [vmem:[%s1 + $0xeb8] sm:$0xff]
  %v523 = vld [vmem:[%s1 + $0xec0] sm:$0xff]
  %v524 = vld [vmem:[%s1 + $0xec8] sm:$0xff]
  %v525 = vld [vmem:[%s1 + $0xed0] sm:$0xff]
  %v526 = vld [vmem:[%s1 + $0xed8] sm:$0xff]
  %v527 = vld [vmem:[%s1 + $0xee0] sm:$0xff]
  %v528 = vld [vmem:[%s1 + $0xee8] sm:$0xff]
  %v529 = vld [vmem:[%s1 + $0xef0] sm:$0xff]
  %v530 = vld [vmem:[%s1 + $0xef8] sm:$0xff]
  %v531 = vld [vmem:[%s1 + $0xf00] sm:$0xff]
  %v532 = vld [vmem:[%s1 + $0xf08] sm:$0xff]
  %v533 = vld [vmem:[%s1 + $0xf10] sm:$0xff]
  %v534 = vld [vmem:[%s1 + $0xf18] sm:$0xff]
  %v535 = vld [vmem:[%s1 + $0xf20] sm:$0xff]
  %v536 = vld [vmem:[%s1 + $0xf28] sm:$0xff]
  %v537 = vld [vmem:[%s1 + $0xf30] sm:$0xff]
  %v538 = vld [vmem:[%s1 + $0xf38] sm:$0xff]
  %v539 = vld [vmem:[%s1 + $0xf40] sm:$0xff]
  %v540 = vld [vmem:[%s1 + $0xf48] sm:$0xff]
  %v541 = vld [vmem:[%s1 + $0xf50] sm:$0xff]
  %v542 = vld [vmem:[%s1 + $0xf58] sm:$0xff]
  %v543 = vld [vmem:[%s1 + $0xf60] sm:$0xff]
  %v544 = vld [vmem:[%s1 + $0xf68] sm:$0xff]
  %v545 = vld [vmem:[%s1 + $0xf70] sm:$0xff]
  %v546 = vld [vmem:[%s1 + $0xf78] sm:$0xff]
  %v547 = vld [vmem:[%s1 + $0xf80] sm:$0xff]
  %v548 = vld [vmem:[%s1 + $0xf88] sm:$0xff]
  %v549 = vld [vmem:[%s1 + $0xf90] sm:$0xff]
  %v550 = vld [vmem:[%s1 + $0xf98] sm:$0xff]
  %v551 = vld [vmem:[%s1 + $0xfa0] sm:$0xff]
  %v552 = vld [vmem:[%s1 + $0xfa8] sm:$0xff]
  %v553 = vld [vmem:[%s1 + $0xfb0] sm:$0xff]
  %v554 = vld [vmem:[%s1 + $0xfb8] sm:$0xff]
  %v555 = vld [vmem:[%s1 + $0xfc0] sm:$0xff]
  %v556 = vld [vmem:[%s1 + $0xfc8] sm:$0xff]
  %v557 = vld [vmem:[%s1 + $0xfd0] sm:$0xff]
  %v558 = vld [vmem:[%s1 + $0xfd8] sm:$0xff]
  %v559 = vld [vmem:[%s1 + $0xfe0] sm:$0xff]
  %v560 = vld [vmem:[%s1 + $0xfe8] sm:$0xff]
  %v561 = vld [vmem:[%s1 + $0xff0] sm:$0xff]
  %v562 = vld [vmem:[%s1 + $0xff8] sm:$0xff]
  %v563 = vld [vmem:[%s1 + $0x1000] sm:$0xff]
  %v564 = vld [vmem:[%s1 + $0x1008] sm:$0xff]
  %v565 = vld [vmem:[%s1 + $0x1010] sm:$0xff]
  %v566 = vld [vmem:[%s1 + $0x1018] sm:$0xff]
  %v567 = vld [vmem:[%s1 + $0x1020] sm:$0xff]
  %v568 = vld [vmem:[%s1 + $0x1028] sm:$0xff]
  %v569 = vld [vmem:[%s1 + $0x1030] sm:$0xff]
  %v570 = vld [vmem:[%s1 + $0x1038] sm:$0xff]
  %v571 = vld [vmem:[%s1 + $0x1040] sm:$0xff]
  %v572 = vld [vmem:[%s1 + $0x1048] sm:$0xff]
  %v573 = vld [vmem:[%s1 + $0x1050] sm:$0xff]
  %v574 = vld [vmem:[%s1 + $0x1058] sm:$0xff]
  %v575 = vld [vmem:[%s1 + $0x1060] sm:$0xff]
  %v576 = vld [vmem:[%s1 + $0x1068] sm:$0xff]
  %v577 = vld [vmem:[%s1 + $0x1070] sm:$0xff]
  %v578 = vld [vmem:[%s1 + $0x1078] sm:$0xff]
  %v579 = vld [vmem:[%s1 + $0x1080] sm:$0xff]
  %v580 = vld [vmem:[%s1 + $0x1088] sm:$0xff]
  %v581 = vld [vmem:[%s1 + $0x1090] sm:$0xff]
  %v582 = vld [vmem:[%s1 + $0x1098] sm:$0xff]
  %v583 = vld [vmem:[%s1 + $0x10a0] sm:$0xff]
  %v584 = vld [vmem:[%s1 + $0x10a8] sm:$0xff]
  %v585 = vld [vmem:[%s1 + $0x10b0] sm:$0xff]
  %v586 = vld [vmem:[%s1 + $0x10b8] sm:$0xff]
  %v587 = vld [vmem:[%s1 + $0x10c0] sm:$0xff]
  %v588 = vld [vmem:[%s1 + $0x10c8] sm:$0xff]
  %v589 = vld [vmem:[%s1 + $0x10d0] sm:$0xff]
  %v590 = vld [vmem:[%s1 + $0x10d8] sm:$0xff]
  %v591 = vld [vmem:[%s1 + $0x10e0] sm:$0xff]
  %v592 = vld [vmem:[%s1 + $0x10e8] sm:$0xff]
  %v593 = vld [vmem:[%s1 + $0x10f0] sm:$0xff]
  %v594 = vld [vmem:[%s1 + $0x10f8] sm:$0xff]
  %v595 = vld [vmem:[%s1 + $0x1100] sm:$0xff]
  %v596 = vld [vmem:[%s1 + $0x1108] sm:$0xff]
  %v597 = vld [vmem:[%s1 + $0x1110] sm:$0xff]
  %v598 = vld [vmem:[%s1 + $0x1118] sm:$0xff]
  %v599 = vld [vmem:[%s1 + $0x1120] sm:$0xff]
  %v600 = vld [vmem:[%s1 + $0x1128] sm:$0xff]
  %v601 = vld [vmem:[%s1 + $0x1130] sm:$0xff]
  %v602 = vld [vmem:[%s1 + $0x1138] sm:$0xff]
  %v603 = vld [vmem:[%s1 + $0x1140] sm:$0xff]
  %v604 = vld [vmem:[%s1 + $0x1148] sm:$0xff]
  %v605 = vld [vmem:[%s1 + $0x1150] sm:$0xff]
  %v606 = vld [vmem:[%s1 + $0x1158] sm:$0xff]
  %v607 = vld [vmem:[%s1 + $0x1160] sm:$0xff]
  %v608 = vld [vmem:[%s1 + $0x1168] sm:$0xff]
  %v609 = vld [vmem:[%s1 + $0x1170] sm:$0xff]
  %v610 = vld [vmem:[%s1 + $0x1178] sm:$0xff]
  %v611 = vld [vmem:[%s1 + $0x1180] sm:$0xff]
  %v612 = vld [vmem:[%s1 + $0x1188] sm:$0xff]
  %v613 = vld [vmem:[%s1 + $0x1190] sm:$0xff]
  %v614 = vld [vmem:[%s1 + $0x1198] sm:$0xff]
  %v615 = vld [vmem:[%s1 + $0x11a0] sm:$0xff]
  %v616 = vld [vmem:[%s1 + $0x11a8] sm:$0xff]
  %v617 = vld [vmem:[%s1 + $0x11b0] sm:$0xff]
  %v618 = vld [vmem:[%s1 + $0x11b8] sm:$0xff]
  %v619 = vld [vmem:[%s1 + $0x11c0] sm:$0xff]
  %v620 = vld [vmem:[%s1 + $0x11c8] sm:$0xff]
  %v621 = vld [vmem:[%s1 + $0x11d0] sm:$0xff]
  %v622 = vld [vmem:[%s1 + $0x11d8] sm:$0xff]
  %v623 = vld [vmem:[%s1 + $0x11e0] sm:$0xff]
  %v624 = vld [vmem:[%s1 + $0x11e8] sm:$0xff]
  %v625 = vld [vmem:[%s1 + $0x11f0] sm:$0xff]
  %v626 = vld [vmem:[%s1 + $0x11f8] sm:$0xff]
  %v627 = vld [vmem:[%s1 + $0x1200] sm:$0xff]
  %v628 = vld [vmem:[%s1 + $0x1208] sm:$0xff]
  %v629 = vld [vmem:[%s1 + $0x1210] sm:$0xff]
  %v630 = vld [vmem:[%s1 + $0x1218] sm:$0xff]
  %v631 = vld [vmem:[%s1 + $0x1220] sm:$0xff]
  %v632 = vld [vmem:[%s1 + $0x1228] sm:$0xff]
  %v633 = vld [vmem:[%s1 + $0x1230] sm:$0xff]
  %v634 = vld [vmem:[%s1 + $0x1238] sm:$0xff]
  %v635 = vld [vmem:[%s1 + $0x1240] sm:$0xff]
  %v636 = vld [vmem:[%s1 + $0x1248] sm:$0xff]
  %v637 = vld [vmem:[%s1 + $0x1250] sm:$0xff]
  %v638 = vld [vmem:[%s1 + $0x1258] sm:$0xff]
  %v639 = vld [vmem:[%s1 + $0x1260] sm:$0xff]
  %v640 = vld [vmem:[%s1 + $0x1268] sm:$0xff]
  %v641 = vld [vmem:[%s1 + $0x1270] sm:$0xff]
  %v642 = vld [vmem:[%s1 + $0x1278] sm:$0xff]
  %v643 = vld [vmem:[%s1 + $0x1280] sm:$0xff]
  %v644 = vld [vmem:[%s1 + $0x1288] sm:$0xff]
  %v645 = vld [vmem:[%s1 + $0x1290] sm:$0xff]
  %v646 = vld [vmem:[%s1 + $0x1298] sm:$0xff]
  %v647 = vld [vmem:[%s1 + $0x12a0] sm:$0xff]
  %v648 = vld [vmem:[%s1 + $0x12a8] sm:$0xff]
  %v649 = vld [vmem:[%s1 + $0x12b0] sm:$0xff]
  %v650 = vld [vmem:[%s1 + $0x12b8] sm:$0xff]
  %v651 = vld [vmem:[%s1 + $0x12c0] sm:$0xff]
  %v652 = vld [vmem:[%s1 + $0x12c8] sm:$0xff]
  %v653 = vld [vmem:[%s1 + $0x12d0] sm:$0xff]
  %v654 = vld [vmem:[%s1 + $0x12d8] sm:$0xff]
  %v655 = vld [vmem:[%s1 + $0x12e0] sm:$0xff]
  %v656 = vld [vmem:[%s1 + $0x12e8] sm:$0xff]
  %v657 = vld [vmem:[%s1 + $0x12f0] sm:$0xff]
  %v658 = vld [vmem:[%s1 + $0x12f8] sm:$0xff]
  %v659 = vld [vmem:[%s1 + $0x1300] sm:$0xff]
  %v660 = vld [vmem:[%s1 + $0x1308] sm:$0xff]
  %v661 = vld [vmem:[%s1 + $0x1310] sm:$0xff]
  %v662 = vld [vmem:[%s1 + $0x1318] sm:$0xff]
  %v663 = vld [vmem:[%s1 + $0x1320] sm:$0xff]
  %v664 = vld [vmem:[%s1 + $0x1328] sm:$0xff]
  %v665 = vld [vmem:[%s1 + $0x1330] sm:$0xff]
  %v666 = vld [vmem:[%s1 + $0x1338] sm:$0xff]
  %v667 = vld [vmem:[%s1 + $0x1340] sm:$0xff]
  %v668 = vld [vmem:[%s1 + $0x1348] sm:$0xff]
  %v669 = vld [vmem:[%s1 + $0x1350] sm:$0xff]
  %v670 = vld [vmem:[%s1 + $0x1358] sm:$0xff]
  %v671 = vld [vmem:[%s1 + $0x1360] sm:$0xff]
  %v672 = vld [vmem:[%s1 + $0x1368] sm:$0xff]
  %v673 = vld [vmem:[%s1 + $0x1370] sm:$0xff]
  %v674 = vld [vmem:[%s1 + $0x1378] sm:$0xff]
  %v675 = vld [vmem:[%s1 + $0x1380] sm:$0xff]
  %v676 = vld [vmem:[%s1 + $0x1388] sm:$0xff]
  %v677 = vld [vmem:[%s1 + $0x1390] sm:$0xff]
  %v678 = vld [vmem:[%s1 + $0x1398] sm:$0xff]
  %v679 = vld [vmem:[%s1 + $0x13a0] sm:$0xff]
  %v680 = vld [vmem:[%s1 + $0x13a8] sm:$0xff]
  %v681 = vld [vmem:[%s1 + $0x13b0] sm:$0xff]
  %v682 = vld [vmem:[%s1 + $0x13b8] sm:$0xff]
  %v683 = vld [vmem:[%s1 + $0x13c0] sm:$0xff]
  %v684 = vld [vmem:[%s1 + $0x13c8] sm:$0xff]
  %v685 = vld [vmem:[%s1 + $0x13d0] sm:$0xff]
  %v686 = vld [vmem:[%s1 + $0x13d8] sm:$0xff]
  %v687 = vld [vmem:[%s1 + $0x13e0] sm:$0xff]
  %v688 = vld [vmem:[%s1 + $0x13e8] sm:$0xff]
  %v689 = vld [vmem:[%s1 + $0x13f0] sm:$0xff]
  %v690 = vld [vmem:[%s1 + $0x13f8] sm:$0xff]
  %691 = vmatpush.msra.mxu0 %v66
  %692 = vmatpush.msra.mxu0 %v65
  %693 = vmatpush.msra.mxu0 %v64
  %694 = vmatpush.msra.mxu0 %v63
  %695 = vmatpush.msra.mxu0 %v62
  %696 = vmatpush.msra.mxu0 %v61
  %697 = vmatpush.msra.mxu0 %v60
  %698 = vmatpush.msra.mxu0 %v59
  %699 = vmatpush.msra.mxu0 %v58
  %700 = vmatpush.msra.mxu0 %v57
  %701 = vmatpush.msra.mxu0 %v56
  %702 = vmatpush.msra.mxu0 %v55
  %703 = vmatpush.msra.mxu0 %v54
  %704 = vmatpush.msra.mxu0 %v53
  %705 = vmatpush.msra.mxu0 %v52
  %706 = vmatpush.msra.mxu0 %v51
  %707 = vmatmul.f32.gmra.mxu0 %v11
  %v708 = vpop.f32.mrf.mxu0
  %v709 = vadd.f32 0.0, %v708
  %710 = vdwg.mxu0
  %711 = vmatpush.msra.mxu0 %v82
  %712 = vmatpush.msra.mxu0 %v81
  %713 = vmatpush.msra.mxu0 %v80
  %714 = vmatpush.msra.mxu0 %v79
  %715 = vmatpush.msra.mxu0 %v78
  %716 = vmatpush.msra.mxu0 %v77
  %717 = vmatpush.msra.mxu0 %v76
  %718 = vmatpush.msra.mxu0 %v75
  %719 = vmatpush.msra.mxu0 %v74
  %720 = vmatpush.msra.mxu0 %v73
  %721 = vmatpush.msra.mxu0 %v72
  %722 = vmatpush.msra.mxu0 %v71
  %723 = vmatpush.msra.mxu0 %v70
  %724 = vmatpush.msra.mxu0 %v69
  %725 = vmatpush.msra.mxu0 %v68
  %726 = vmatpush.msra.mxu0 %v67
  %727 = vmatmul.f32.gmra.mxu0 %v12
  %v728 = vpop.f32.mrf.mxu0
  %v729 = vadd.f32 %v709, %v728
  %730 = vdwg.mxu0
  %731 = vmatpush.msra.mxu0 %v98
  %732 = vmatpush.msra.mxu0 %v97
  %733 = vmatpush.msra.mxu0 %v96
  %734 = vmatpush.msra.mxu0 %v95
  %735 = vmatpush.msra.mxu0 %v94
  %736 = vmatpush.msra.mxu0 %v93
  %737 = vmatpush.msra.mxu0 %v92
  %738 = vmatpush.msra.mxu0 %v91
  %739 = vmatpush.msra.mxu0 %v90
  %740 = vmatpush.msra.mxu0 %v89
  %741 = vmatpush.msra.mxu0 %v88
  %742 = vmatpush.msra.mxu0 %v87
  %743 = vmatpush.msra.mxu0 %v86
  %744 = vmatpush.msra.mxu0 %v85
  %745 = vmatpush.msra.mxu0 %v84
  %746 = vmatpush.msra.mxu0 %v83
  %747 = vmatmul.f32.gmra.mxu0 %v13
  %v748 = vpop.f32.mrf.mxu0
  %v749 = vadd.f32 %v729, %v748
  %750 = vdwg.mxu0
  %751 = vmatpush.msra.mxu0 %v114
  %752 = vmatpush.msra.mxu0 %v113
  %753 = vmatpush.msra.mxu0 %v112
  %754 = vmatpush.msra.mxu0 %v111
  %755 = vmatpush.msra.mxu0 %v110
  %756 = vmatpush.msra.mxu0 %v109
  %757 = vmatpush.msra.mxu0 %v108
  %758 = vmatpush.msra.mxu0 %v107
  %759 = vmatpush.msra.mxu0 %v106
  %760 = vmatpush.msra.mxu0 %v105
  %761 = vmatpush.msra.mxu0 %v104
  %762 = vmatpush.msra.mxu0 %v103
  %763 = vmatpush.msra.mxu0 %v102
  %764 = vmatpush.msra.mxu0 %v101
  %765 = vmatpush.msra.mxu0 %v100
  %766 = vmatpush.msra.mxu0 %v99
  %767 = vmatmul.f32.gmra.mxu0 %v14
  %v768 = vpop.f32.mrf.mxu0
  %v769 = vadd.f32 %v749, %v768
  %770 = vdwg.mxu0
  %771 = vmatpush.msra.mxu0 %v130
  %772 = vmatpush.msra.mxu0 %v129
  %773 = vmatpush.msra.mxu0 %v128
  %774 = vmatpush.msra.mxu0 %v127
  %775 = vmatpush.msra.mxu0 %v126
  %776 = vmatpush.msra.mxu0 %v125
  %777 = vmatpush.msra.mxu0 %v124
  %778 = vmatpush.msra.mxu0 %v123
  %779 = vmatpush.msra.mxu0 %v122
  %780 = vmatpush.msra.mxu0 %v121
  %781 = vmatpush.msra.mxu0 %v120
  %782 = vmatpush.msra.mxu0 %v119
  %783 = vmatpush.msra.mxu0 %v118
  %784 = vmatpush.msra.mxu0 %v117
  %785 = vmatpush.msra.mxu0 %v116
  %786 = vmatpush.msra.mxu0 %v115
  %787 = vmatmul.f32.gmra.mxu0 %v15
  %v788 = vpop.f32.mrf.mxu0
  %v789 = vadd.f32 %v769, %v788
  %790 = vdwg.mxu0
  %791 = vmatpush.msra.mxu0 %v146
  %792 = vmatpush.msra.mxu0 %v145
  %793 = vmatpush.msra.mxu0 %v144
  %794 = vmatpush.msra.mxu0 %v143
  %795 = vmatpush.msra.mxu0 %v142
  %796 = vmatpush.msra.mxu0 %v141
  %797 = vmatpush.msra.mxu0 %v140
  %798 = vmatpush.msra.mxu0 %v139
  %799 = vmatpush.msra.mxu0 %v138
  %800 = vmatpush.msra.mxu0 %v137
  %801 = vmatpush.msra.mxu0 %v136
  %802 = vmatpush.msra.mxu0 %v135
  %803 = vmatpush.msra.mxu0 %v134
  %804 = vmatpush.msra.mxu0 %v133
  %805 = vmatpush.msra.mxu0 %v132
  %806 = vmatpush.msra.mxu0 %v131
  %807 = vmatmul.f32.gmra.mxu0 %v16
  %v808 = vpop.f32.mrf.mxu0
  %v809 = vadd.f32 %v789, %v808
  %810 = vdwg.mxu0
  %811 = vmatpush.msra.mxu0 %v162
  %812 = vmatpush.msra.mxu0 %v161
  %813 = vmatpush.msra.mxu0 %v160
  %814 = vmatpush.msra.mxu0 %v159
  %815 = vmatpush.msra.mxu0 %v158
  %816 = vmatpush.msra.mxu0 %v157
  %817 = vmatpush.msra.mxu0 %v156
  %818 = vmatpush.msra.mxu0 %v155
  %819 = vmatpush.msra.mxu0 %v154
  %820 = vmatpush.msra.mxu0 %v153
  %821 = vmatpush.msra.mxu0 %v152
  %822 = vmatpush.msra.mxu0 %v151
  %823 = vmatpush.msra.mxu0 %v150
  %824 = vmatpush.msra.mxu0 %v149
  %825 = vmatpush.msra.mxu0 %v148
  %826 = vmatpush.msra.mxu0 %v147
  %827 = vmatmul.f32.gmra.mxu0 %v17
  %v828 = vpop.f32.mrf.mxu0
  %v829 = vadd.f32 %v809, %v828
  %830 = vdwg.mxu0
  %831 = vmatpush.msra.mxu0 %v178
  %832 = vmatpush.msra.mxu0 %v177
  %833 = vmatpush.msra.mxu0 %v176
  %834 = vmatpush.msra.mxu0 %v175
  %835 = vmatpush.msra.mxu0 %v174
  %836 = vmatpush.msra.mxu0 %v173
  %837 = vmatpush.msra.mxu0 %v172
  %838 = vmatpush.msra.mxu0 %v171
  %839 = vmatpush.msra.mxu0 %v170
  %840 = vmatpush.msra.mxu0 %v169
  %841 = vmatpush.msra.mxu0 %v168
  %842 = vmatpush.msra.mxu0 %v167
  %843 = vmatpush.msra.mxu0 %v166
  %844 = vmatpush.msra.mxu0 %v165
  %845 = vmatpush.msra.mxu0 %v164
  %846 = vmatpush.msra.mxu0 %v163
  %847 = vmatmul.f32.gmra.mxu0 %v18
  %v848 = vpop.f32.mrf.mxu0
  %v849 = vadd.f32 %v829, %v848
  %850 = vdwg.mxu0
  %851 = vmatpush.msra.mxu0 %v194
  %852 = vmatpush.msra.mxu0 %v193
  %853 = vmatpush.msra.mxu0 %v192
  %854 = vmatpush.msra.mxu0 %v191
  %855 = vmatpush.msra.mxu0 %v190
  %856 = vmatpush.msra.mxu0 %v189
  %857 = vmatpush.msra.mxu0 %v188
  %858 = vmatpush.msra.mxu0 %v187
  %859 = vmatpush.msra.mxu0 %v186
  %860 = vmatpush.msra.mxu0 %v185
  %861 = vmatpush.msra.mxu0 %v184
  %862 = vmatpush.msra.mxu0 %v183
  %863 = vmatpush.msra.mxu0 %v182
  %864 = vmatpush.msra.mxu0 %v181
  %865 = vmatpush.msra.mxu0 %v180
  %866 = vmatpush.msra.mxu0 %v179
  %867 = vmatmul.f32.gmra.mxu0 %v19
  %v868 = vpop.f32.mrf.mxu0
  %v869 = vadd.f32 %v849, %v868
  %870 = vdwg.mxu0
  %871 = vmatpush.msra.mxu0 %v210
  %872 = vmatpush.msra.mxu0 %v209
  %873 = vmatpush.msra.mxu0 %v208
  %874 = vmatpush.msra.mxu0 %v207
  %875 = vmatpush.msra.mxu0 %v206
  %876 = vmatpush.msra.mxu0 %v205
  %877 = vmatpush.msra.mxu0 %v204
  %878 = vmatpush.msra.mxu0 %v203
  %879 = vmatpush.msra.mxu0 %v202
  %880 = vmatpush.msra.mxu0 %v201
  %881 = vmatpush.msra.mxu0 %v200
  %882 = vmatpush.msra.mxu0 %v199
  %883 = vmatpush.msra.mxu0 %v198
  %884 = vmatpush.msra.mxu0 %v197
  %885 = vmatpush.msra.mxu0 %v196
  %886 = vmatpush.msra.mxu0 %v195
  %887 = vmatmul.f32.gmra.mxu0 %v20
  %v888 = vpop.f32.mrf.mxu0
  %v889 = vadd.f32 %v869, %v888
  %890 = vdwg.mxu0
  %891 = vmatpush.msra.mxu0 %v226
  %892 = vmatpush.msra.mxu0 %v225
  %893 = vmatpush.msra.mxu0 %v224
  %894 = vmatpush.msra.mxu0 %v223
  %895 = vmatpush.msra.mxu0 %v222
  %896 = vmatpush.msra.mxu0 %v221
  %897 = vmatpush.msra.mxu0 %v220
  %898 = vmatpush.msra.mxu0 %v219
  %899 = vmatpush.msra.mxu0 %v218
  %900 = vmatpush.msra.mxu0 %v217
  %901 = vmatpush.msra.mxu0 %v216
  %902 = vmatpush.msra.mxu0 %v215
  %903 = vmatpush.msra.mxu0 %v214
  %904 = vmatpush.msra.mxu0 %v213
  %905 = vmatpush.msra.mxu0 %v212
  %906 = vmatpush.msra.mxu0 %v211
  %907 = vmatmul.f32.gmra.mxu0 %v21
  %v908 = vpop.f32.mrf.mxu0
  %v909 = vadd.f32 %v889, %v908
  %910 = vdwg.mxu0
  %911 = vmatpush.msra.mxu0 %v242
  %912 = vmatpush.msra.mxu0 %v241
  %913 = vmatpush.msra.mxu0 %v240
  %914 = vmatpush.msra.mxu0 %v239
  %915 = vmatpush.msra.mxu0 %v238
  %916 = vmatpush.msra.mxu0 %v237
  %917 = vmatpush.msra.mxu0 %v236
  %918 = vmatpush.msra.mxu0 %v235
  %919 = vmatpush.msra.mxu0 %v234
  %920 = vmatpush.msra.mxu0 %v233
  %921 = vmatpush.msra.mxu0 %v232
  %922 = vmatpush.msra.mxu0 %v231
  %923 = vmatpush.msra.mxu0 %v230
  %924 = vmatpush.msra.mxu0 %v229
  %925 = vmatpush.msra.mxu0 %v228
  %926 = vmatpush.msra.mxu0 %v227
  %927 = vmatmul.f32.gmra.mxu0 %v22
  %v928 = vpop.f32.mrf.mxu0
  %v929 = vadd.f32 %v909, %v928
  %930 = vdwg.mxu0
  %931 = vmatpush.msra.mxu0 %v258
  %932 = vmatpush.msra.mxu0 %v257
  %933 = vmatpush.msra.mxu0 %v256
  %934 = vmatpush.msra.mxu0 %v255
  %935 = vmatpush.msra.mxu0 %v254
  %936 = vmatpush.msra.mxu0 %v253
  %937 = vmatpush.msra.mxu0 %v252
  %938 = vmatpush.msra.mxu0 %v251
  %939 = vmatpush.msra.mxu0 %v250
  %940 = vmatpush.msra.mxu0 %v249
  %941 = vmatpush.msra.mxu0 %v248
  %942 = vmatpush.msra.mxu0 %v247
  %943 = vmatpush.msra.mxu0 %v246
  %944 = vmatpush.msra.mxu0 %v245
  %945 = vmatpush.msra.mxu0 %v244
  %946 = vmatpush.msra.mxu0 %v243
  %947 = vmatmul.f32.gmra.mxu0 %v23
  %v948 = vpop.f32.mrf.mxu0
  %v949 = vadd.f32 %v929, %v948
  %950 = vdwg.mxu0
  %951 = vmatpush.msra.mxu0 %v274
  %952 = vmatpush.msra.mxu0 %v273
  %953 = vmatpush.msra.mxu0 %v272
  %954 = vmatpush.msra.mxu0 %v271
  %955 = vmatpush.msra.mxu0 %v270
  %956 = vmatpush.msra.mxu0 %v269
  %957 = vmatpush.msra.mxu0 %v268
  %958 = vmatpush.msra.mxu0 %v267
  %959 = vmatpush.msra.mxu0 %v266
  %960 = vmatpush.msra.mxu0 %v265
  %961 = vmatpush.msra.mxu0 %v264
  %962 = vmatpush.msra.mxu0 %v263
  %963 = vmatpush.msra.mxu0 %v262
  %964 = vmatpush.msra.mxu0 %v261
  %965 = vmatpush.msra.mxu0 %v260
  %966 = vmatpush.msra.mxu0 %v259
  %967 = vmatmul.f32.gmra.mxu0 %v24
  %v968 = vpop.f32.mrf.mxu0
  %v969 = vadd.f32 %v949, %v968
  %970 = vdwg.mxu0
  %971 = vmatpush.msra.mxu0 %v290
  %972 = vmatpush.msra.mxu0 %v289
  %973 = vmatpush.msra.mxu0 %v288
  %974 = vmatpush.msra.mxu0 %v287
  %975 = vmatpush.msra.mxu0 %v286
  %976 = vmatpush.msra.mxu0 %v285
  %977 = vmatpush.msra.mxu0 %v284
  %978 = vmatpush.msra.mxu0 %v283
  %979 = vmatpush.msra.mxu0 %v282
  %980 = vmatpush.msra.mxu0 %v281
  %981 = vmatpush.msra.mxu0 %v280
  %982 = vmatpush.msra.mxu0 %v279
  %983 = vmatpush.msra.mxu0 %v278
  %984 = vmatpush.msra.mxu0 %v277
  %985 = vmatpush.msra.mxu0 %v276
  %986 = vmatpush.msra.mxu0 %v275
  %987 = vmatmul.f32.gmra.mxu0 %v25
  %v988 = vpop.f32.mrf.mxu0
  %v989 = vadd.f32 %v969, %v988
  %990 = vdwg.mxu0
  %991 = vmatpush.msra.mxu0 %v306
  %992 = vmatpush.msra.mxu0 %v305
  %993 = vmatpush.msra.mxu0 %v304
  %994 = vmatpush.msra.mxu0 %v303
  %995 = vmatpush.msra.mxu0 %v302
  %996 = vmatpush.msra.mxu0 %v301
  %997 = vmatpush.msra.mxu0 %v300
  %998 = vmatpush.msra.mxu0 %v299
  %999 = vmatpush.msra.mxu0 %v298
  %1000 = vmatpush.msra.mxu0 %v297
  %1001 = vmatpush.msra.mxu0 %v296
  %1002 = vmatpush.msra.mxu0 %v295
  %1003 = vmatpush.msra.mxu0 %v294
  %1004 = vmatpush.msra.mxu0 %v293
  %1005 = vmatpush.msra.mxu0 %v292
  %1006 = vmatpush.msra.mxu0 %v291
  %1007 = vmatmul.f32.gmra.mxu0 %v26
  %v1008 = vpop.f32.mrf.mxu0
  %v1009 = vadd.f32 %v989, %v1008
  %1010 = vdwg.mxu0
  %1011 = vmatpush.msra.mxu0 %v322
  %1012 = vmatpush.msra.mxu0 %v321
  %1013 = vmatpush.msra.mxu0 %v320
  %1014 = vmatpush.msra.mxu0 %v319
  %1015 = vmatpush.msra.mxu0 %v318
  %1016 = vmatpush.msra.mxu0 %v317
  %1017 = vmatpush.msra.mxu0 %v316
  %1018 = vmatpush.msra.mxu0 %v315
  %1019 = vmatpush.msra.mxu0 %v314
  %1020 = vmatpush.msra.mxu0 %v313
  %1021 = vmatpush.msra.mxu0 %v312
  %1022 = vmatpush.msra.mxu0 %v311
  %1023 = vmatpush.msra.mxu0 %v310
  %1024 = vmatpush.msra.mxu0 %v309
  %1025 = vmatpush.msra.mxu0 %v308
  %1026 = vmatpush.msra.mxu0 %v307
  %1027 = vmatmul.f32.gmra.mxu0 %v27
  %v1028 = vpop.f32.mrf.mxu0
  %v1029 = vadd.f32 %v1009, %v1028
  %1030 = vdwg.mxu0
  %1031 = vmatpush.msra.mxu0 %v338
  %1032 = vmatpush.msra.mxu0 %v337
  %1033 = vmatpush.msra.mxu0 %v336
  %1034 = vmatpush.msra.mxu0 %v335
  %1035 = vmatpush.msra.mxu0 %v334
  %1036 = vmatpush.msra.mxu0 %v333
  %1037 = vmatpush.msra.mxu0 %v332
  %1038 = vmatpush.msra.mxu0 %v331
  %1039 = vmatpush.msra.mxu0 %v330
  %1040 = vmatpush.msra.mxu0 %v329
  %1041 = vmatpush.msra.mxu0 %v328
  %1042 = vmatpush.msra.mxu0 %v327
  %1043 = vmatpush.msra.mxu0 %v326
  %1044 = vmatpush.msra.mxu0 %v325
  %1045 = vmatpush.msra.mxu0 %v324
  %1046 = vmatpush.msra.mxu0 %v323
  %1047 = vmatmul.f32.gmra.mxu0 %v28
  %v1048 = vpop.f32.mrf.mxu0
  %v1049 = vadd.f32 %v1029, %v1048
  %1050 = vdwg.mxu0
  %1051 = vmatpush.msra.mxu0 %v354
  %1052 = vmatpush.msra.mxu0 %v353
  %1053 = vmatpush.msra.mxu0 %v352
  %1054 = vmatpush.msra.mxu0 %v351
  %1055 = vmatpush.msra.mxu0 %v350
  %1056 = vmatpush.msra.mxu0 %v349
  %1057 = vmatpush.msra.mxu0 %v348
  %1058 = vmatpush.msra.mxu0 %v347
  %1059 = vmatpush.msra.mxu0 %v346
  %1060 = vmatpush.msra.mxu0 %v345
  %1061 = vmatpush.msra.mxu0 %v344
  %1062 = vmatpush.msra.mxu0 %v343
  %1063 = vmatpush.msra.mxu0 %v342
  %1064 = vmatpush.msra.mxu0 %v341
  %1065 = vmatpush.msra.mxu0 %v340
  %1066 = vmatpush.msra.mxu0 %v339
  %1067 = vmatmul.f32.gmra.mxu0 %v29
  %v1068 = vpop.f32.mrf.mxu0
  %v1069 = vadd.f32 %v1049, %v1068
  %1070 = vdwg.mxu0
  %1071 = vmatpush.msra.mxu0 %v370
  %1072 = vmatpush.msra.mxu0 %v369
  %1073 = vmatpush.msra.mxu0 %v368
  %1074 = vmatpush.msra.mxu0 %v367
  %1075 = vmatpush.msra.mxu0 %v366
  %1076 = vmatpush.msra.mxu0 %v365
  %1077 = vmatpush.msra.mxu0 %v364
  %1078 = vmatpush.msra.mxu0 %v363
  %1079 = vmatpush.msra.mxu0 %v362
  %1080 = vmatpush.msra.mxu0 %v361
  %1081 = vmatpush.msra.mxu0 %v360
  %1082 = vmatpush.msra.mxu0 %v359
  %1083 = vmatpush.msra.mxu0 %v358
  %1084 = vmatpush.msra.mxu0 %v357
  %1085 = vmatpush.msra.mxu0 %v356
  %1086 = vmatpush.msra.mxu0 %v355
  %1087 = vmatmul.f32.gmra.mxu0 %v30
  %v1088 = vpop.f32.mrf.mxu0
  %v1089 = vadd.f32 %v1069, %v1088
  %1090 = vdwg.mxu0
  %1091 = vmatpush.msra.mxu0 %v386
  %1092 = vmatpush.msra.mxu0 %v385
  %1093 = vmatpush.msra.mxu0 %v384
  %1094 = vmatpush.msra.mxu0 %v383
  %1095 = vmatpush.msra.mxu0 %v382
  %1096 = vmatpush.msra.mxu0 %v381
  %1097 = vmatpush.msra.mxu0 %v380
  %1098 = vmatpush.msra.mxu0 %v379
  %1099 = vmatpush.msra.mxu0 %v378
  %1100 = vmatpush.msra.mxu0 %v377
  %1101 = vmatpush.msra.mxu0 %v376
  %1102 = vmatpush.msra.mxu0 %v375
  %1103 = vmatpush.msra.mxu0 %v374
  %1104 = vmatpush.msra.mxu0 %v373
  %1105 = vmatpush.msra.mxu0 %v372
  %1106 = vmatpush.msra.mxu0 %v371
  %1107 = vmatmul.f32.gmra.mxu0 %v31
  %v1108 = vpop.f32.mrf.mxu0
  %v1109 = vadd.f32 %v1089, %v1108
  %1110 = vdwg.mxu0
  %1111 = vmatpush.msra.mxu0 %v402
  %1112 = vmatpush.msra.mxu0 %v401
  %1113 = vmatpush.msra.mxu0 %v400
  %1114 = vmatpush.msra.mxu0 %v399
  %1115 = vmatpush.msra.mxu0 %v398
  %1116 = vmatpush.msra.mxu0 %v397
  %1117 = vmatpush.msra.mxu0 %v396
  %1118 = vmatpush.msra.mxu0 %v395
  %1119 = vmatpush.msra.mxu0 %v394
  %1120 = vmatpush.msra.mxu0 %v393
  %1121 = vmatpush.msra.mxu0 %v392
  %1122 = vmatpush.msra.mxu0 %v391
  %1123 = vmatpush.msra.mxu0 %v390
  %1124 = vmatpush.msra.mxu0 %v389
  %1125 = vmatpush.msra.mxu0 %v388
  %1126 = vmatpush.msra.mxu0 %v387
  %1127 = vmatmul.f32.gmra.mxu0 %v32
  %v1128 = vpop.f32.mrf.mxu0
  %v1129 = vadd.f32 %v1109, %v1128
  %1130 = vdwg.mxu0
  %1131 = vmatpush.msra.mxu0 %v418
  %1132 = vmatpush.msra.mxu0 %v417
  %1133 = vmatpush.msra.mxu0 %v416
  %1134 = vmatpush.msra.mxu0 %v415
  %1135 = vmatpush.msra.mxu0 %v414
  %1136 = vmatpush.msra.mxu0 %v413
  %1137 = vmatpush.msra.mxu0 %v412
  %1138 = vmatpush.msra.mxu0 %v411
  %1139 = vmatpush.msra.mxu0 %v410
  %1140 = vmatpush.msra.mxu0 %v409
  %1141 = vmatpush.msra.mxu0 %v408
  %1142 = vmatpush.msra.mxu0 %v407
  %1143 = vmatpush.msra.mxu0 %v406
  %1144 = vmatpush.msra.mxu0 %v405
  %1145 = vmatpush.msra.mxu0 %v404
  %1146 = vmatpush.msra.mxu0 %v403
  %1147 = vmatmul.f32.gmra.mxu0 %v33
  %v1148 = vpop.f32.mrf.mxu0
  %v1149 = vadd.f32 %v1129, %v1148
  %1150 = vdwg.mxu0
  %1151 = vmatpush.msra.mxu0 %v434
  %1152 = vmatpush.msra.mxu0 %v433
  %1153 = vmatpush.msra.mxu0 %v432
  %1154 = vmatpush.msra.mxu0 %v431
  %1155 = vmatpush.msra.mxu0 %v430
  %1156 = vmatpush.msra.mxu0 %v429
  %1157 = vmatpush.msra.mxu0 %v428
  %1158 = vmatpush.msra.mxu0 %v427
  %1159 = vmatpush.msra.mxu0 %v426
  %1160 = vmatpush.msra.mxu0 %v425
  %1161 = vmatpush.msra.mxu0 %v424
  %1162 = vmatpush.msra.mxu0 %v423
  %1163 = vmatpush.msra.mxu0 %v422
  %1164 = vmatpush.msra.mxu0 %v421
  %1165 = vmatpush.msra.mxu0 %v420
  %1166 = vmatpush.msra.mxu0 %v419
  %1167 = vmatmul.f32.gmra.mxu0 %v34
  %v1168 = vpop.f32.mrf.mxu0
  %v1169 = vadd.f32 %v1149, %v1168
  %1170 = vdwg.mxu0
  %1171 = vmatpush.msra.mxu0 %v450
  %1172 = vmatpush.msra.mxu0 %v449
  %1173 = vmatpush.msra.mxu0 %v448
  %1174 = vmatpush.msra.mxu0 %v447
  %1175 = vmatpush.msra.mxu0 %v446
  %1176 = vmatpush.msra.mxu0 %v445
  %1177 = vmatpush.msra.mxu0 %v444
  %1178 = vmatpush.msra.mxu0 %v443
  %1179 = vmatpush.msra.mxu0 %v442
  %1180 = vmatpush.msra.mxu0 %v441
  %1181 = vmatpush.msra.mxu0 %v440
  %1182 = vmatpush.msra.mxu0 %v439
  %1183 = vmatpush.msra.mxu0 %v438
  %1184 = vmatpush.msra.mxu0 %v437
  %1185 = vmatpush.msra.mxu0 %v436
  %1186 = vmatpush.msra.mxu0 %v435
  %1187 = vmatmul.f32.gmra.mxu0 %v35
  %v1188 = vpop.f32.mrf.mxu0
  %v1189 = vadd.f32 %v1169, %v1188
  %1190 = vdwg.mxu0
  %1191 = vmatpush.msra.mxu0 %v466
  %1192 = vmatpush.msra.mxu0 %v465
  %1193 = vmatpush.msra.mxu0 %v464
  %1194 = vmatpush.msra.mxu0 %v463
  %1195 = vmatpush.msra.mxu0 %v462
  %1196 = vmatpush.msra.mxu0 %v461
  %1197 = vmatpush.msra.mxu0 %v460
  %1198 = vmatpush.msra.mxu0 %v459
  %1199 = vmatpush.msra.mxu0 %v458
  %1200 = vmatpush.msra.mxu0 %v457
  %1201 = vmatpush.msra.mxu0 %v456
  %1202 = vmatpush.msra.mxu0 %v455
  %1203 = vmatpush.msra.mxu0 %v454
  %1204 = vmatpush.msra.mxu0 %v453
  %1205 = vmatpush.msra.mxu0 %v452
  %1206 = vmatpush.msra.mxu0 %v451
  %1207 = vmatmul.f32.gmra.mxu0 %v36
  %v1208 = vpop.f32.mrf.mxu0
  %v1209 = vadd.f32 %v1189, %v1208
  %1210 = vdwg.mxu0
  %1211 = vmatpush.msra.mxu0 %v482
  %1212 = vmatpush.msra.mxu0 %v481
  %1213 = vmatpush.msra.mxu0 %v480
  %1214 = vmatpush.msra.mxu0 %v479
  %1215 = vmatpush.msra.mxu0 %v478
  %1216 = vmatpush.msra.mxu0 %v477
  %1217 = vmatpush.msra.mxu0 %v476
  %1218 = vmatpush.msra.mxu0 %v475
  %1219 = vmatpush.msra.mxu0 %v474
  %1220 = vmatpush.msra.mxu0 %v473
  %1221 = vmatpush.msra.mxu0 %v472
  %1222 = vmatpush.msra.mxu0 %v471
  %1223 = vmatpush.msra.mxu0 %v470
  %1224 = vmatpush.msra.mxu0 %v469
  %1225 = vmatpush.msra.mxu0 %v468
  %1226 = vmatpush.msra.mxu0 %v467
  %1227 = vmatmul.f32.gmra.mxu0 %v37
  %v1228 = vpop.f32.mrf.mxu0
  %v1229 = vadd.f32 %v1209, %v1228
  %1230 = vdwg.mxu0
  %1231 = vmatpush.msra.mxu0 %v498
  %1232 = vmatpush.msra.mxu0 %v497
  %1233 = vmatpush.msra.mxu0 %v496
  %1234 = vmatpush.msra.mxu0 %v495
  %1235 = vmatpush.msra.mxu0 %v494
  %1236 = vmatpush.msra.mxu0 %v493
  %1237 = vmatpush.msra.mxu0 %v492
  %1238 = vmatpush.msra.mxu0 %v491
  %1239 = vmatpush.msra.mxu0 %v490
  %1240 = vmatpush.msra.mxu0 %v489
  %1241 = vmatpush.msra.mxu0 %v488
  %1242 = vmatpush.msra.mxu0 %v487
  %1243 = vmatpush.msra.mxu0 %v486
  %1244 = vmatpush.msra.mxu0 %v485
  %1245 = vmatpush.msra.mxu0 %v484
  %1246 = vmatpush.msra.mxu0 %v483
  %1247 = vmatmul.f32.gmra.mxu0 %v38
  %v1248 = vpop.f32.mrf.mxu0
  %v1249 = vadd.f32 %v1229, %v1248
  %1250 = vdwg.mxu0
  %1251 = vmatpush.msra.mxu0 %v514
  %1252 = vmatpush.msra.mxu0 %v513
  %1253 = vmatpush.msra.mxu0 %v512
  %1254 = vmatpush.msra.mxu0 %v511
  %1255 = vmatpush.msra.mxu0 %v510
  %1256 = vmatpush.msra.mxu0 %v509
  %1257 = vmatpush.msra.mxu0 %v508
  %1258 = vmatpush.msra.mxu0 %v507
  %1259 = vmatpush.msra.mxu0 %v506
  %1260 = vmatpush.msra.mxu0 %v505
  %1261 = vmatpush.msra.mxu0 %v504
  %1262 = vmatpush.msra.mxu0 %v503
  %1263 = vmatpush.msra.mxu0 %v502
  %1264 = vmatpush.msra.mxu0 %v501
  %1265 = vmatpush.msra.mxu0 %v500
  %1266 = vmatpush.msra.mxu0 %v499
  %1267 = vmatmul.f32.gmra.mxu0 %v39
  %v1268 = vpop.f32.mrf.mxu0
  %v1269 = vadd.f32 %v1249, %v1268
  %1270 = vdwg.mxu0
  %1271 = vmatpush.msra.mxu0 %v530
  %1272 = vmatpush.msra.mxu0 %v529
  %1273 = vmatpush.msra.mxu0 %v528
  %1274 = vmatpush.msra.mxu0 %v527
  %1275 = vmatpush.msra.mxu0 %v526
  %1276 = vmatpush.msra.mxu0 %v525
  %1277 = vmatpush.msra.mxu0 %v524
  %1278 = vmatpush.msra.mxu0 %v523
  %1279 = vmatpush.msra.mxu0 %v522
  %1280 = vmatpush.msra.mxu0 %v521
  %1281 = vmatpush.msra.mxu0 %v520
  %1282 = vmatpush.msra.mxu0 %v519
  %1283 = vmatpush.msra.mxu0 %v518
  %1284 = vmatpush.msra.mxu0 %v517
  %1285 = vmatpush.msra.mxu0 %v516
  %1286 = vmatpush.msra.mxu0 %v515
  %1287 = vmatmul.f32.gmra.mxu0 %v40
  %v1288 = vpop.f32.mrf.mxu0
  %v1289 = vadd.f32 %v1269, %v1288
  %1290 = vdwg.mxu0
  %1291 = vmatpush.msra.mxu0 %v546
  %1292 = vmatpush.msra.mxu0 %v545
  %1293 = vmatpush.msra.mxu0 %v544
  %1294 = vmatpush.msra.mxu0 %v543
  %1295 = vmatpush.msra.mxu0 %v542
  %1296 = vmatpush.msra.mxu0 %v541
  %1297 = vmatpush.msra.mxu0 %v540
  %1298 = vmatpush.msra.mxu0 %v539
  %1299 = vmatpush.msra.mxu0 %v538
  %1300 = vmatpush.msra.mxu0 %v537
  %1301 = vmatpush.msra.mxu0 %v536
  %1302 = vmatpush.msra.mxu0 %v535
  %1303 = vmatpush.msra.mxu0 %v534
  %1304 = vmatpush.msra.mxu0 %v533
  %1305 = vmatpush.msra.mxu0 %v532
  %1306 = vmatpush.msra.mxu0 %v531
  %1307 = vmatmul.f32.gmra.mxu0 %v41
  %v1308 = vpop.f32.mrf.mxu0
  %v1309 = vadd.f32 %v1289, %v1308
  %1310 = vdwg.mxu0
  %1311 = vmatpush.msra.mxu0 %v562
  %1312 = vmatpush.msra.mxu0 %v561
  %1313 = vmatpush.msra.mxu0 %v560
  %1314 = vmatpush.msra.mxu0 %v559
  %1315 = vmatpush.msra.mxu0 %v558
  %1316 = vmatpush.msra.mxu0 %v557
  %1317 = vmatpush.msra.mxu0 %v556
  %1318 = vmatpush.msra.mxu0 %v555
  %1319 = vmatpush.msra.mxu0 %v554
  %1320 = vmatpush.msra.mxu0 %v553
  %1321 = vmatpush.msra.mxu0 %v552
  %1322 = vmatpush.msra.mxu0 %v551
  %1323 = vmatpush.msra.mxu0 %v550
  %1324 = vmatpush.msra.mxu0 %v549
  %1325 = vmatpush.msra.mxu0 %v548
  %1326 = vmatpush.msra.mxu0 %v547
  %1327 = vmatmul.f32.gmra.mxu0 %v42
  %v1328 = vpop.f32.mrf.mxu0
  %v1329 = vadd.f32 %v1309, %v1328
  %1330 = vdwg.mxu0
  %1331 = vmatpush.msra.mxu0 %v578
  %1332 = vmatpush.msra.mxu0 %v577
  %1333 = vmatpush.msra.mxu0 %v576
  %1334 = vmatpush.msra.mxu0 %v575
  %1335 = vmatpush.msra.mxu0 %v574
  %1336 = vmatpush.msra.mxu0 %v573
  %1337 = vmatpush.msra.mxu0 %v572
  %1338 = vmatpush.msra.mxu0 %v571
  %1339 = vmatpush.msra.mxu0 %v570
  %1340 = vmatpush.msra.mxu0 %v569
  %1341 = vmatpush.msra.mxu0 %v568
  %1342 = vmatpush.msra.mxu0 %v567
  %1343 = vmatpush.msra.mxu0 %v566
  %1344 = vmatpush.msra.mxu0 %v565
  %1345 = vmatpush.msra.mxu0 %v564
  %1346 = vmatpush.msra.mxu0 %v563
  %1347 = vmatmul.f32.gmra.mxu0 %v43
  %v1348 = vpop.f32.mrf.mxu0
  %v1349 = vadd.f32 %v1329, %v1348
  %1350 = vdwg.mxu0
  %1351 = vmatpush.msra.mxu0 %v594
  %1352 = vmatpush.msra.mxu0 %v593
  %1353 = vmatpush.msra.mxu0 %v592
  %1354 = vmatpush.msra.mxu0 %v591
  %1355 = vmatpush.msra.mxu0 %v590
  %1356 = vmatpush.msra.mxu0 %v589
  %1357 = vmatpush.msra.mxu0 %v588
  %1358 = vmatpush.msra.mxu0 %v587
  %1359 = vmatpush.msra.mxu0 %v586
  %1360 = vmatpush.msra.mxu0 %v585
  %1361 = vmatpush.msra.mxu0 %v584
  %1362 = vmatpush.msra.mxu0 %v583
  %1363 = vmatpush.msra.mxu0 %v582
  %1364 = vmatpush.msra.mxu0 %v581
  %1365 = vmatpush.msra.mxu0 %v580
  %1366 = vmatpush.msra.mxu0 %v579
  %1367 = vmatmul.f32.gmra.mxu0 %v44
  %v1368 = vpop.f32.mrf.mxu0
  %v1369 = vadd.f32 %v1349, %v1368
  %1370 = vdwg.mxu0
  %1371 = vmatpush.msra.mxu0 %v610
  %1372 = vmatpush.msra.mxu0 %v609
  %1373 = vmatpush.msra.mxu0 %v608
  %1374 = vmatpush.msra.mxu0 %v607
  %1375 = vmatpush.msra.mxu0 %v606
  %1376 = vmatpush.msra.mxu0 %v605
  %1377 = vmatpush.msra.mxu0 %v604
  %1378 = vmatpush.msra.mxu0 %v603
  %1379 = vmatpush.msra.mxu0 %v602
  %1380 = vmatpush.msra.mxu0 %v601
  %1381 = vmatpush.msra.mxu0 %v600
  %1382 = vmatpush.msra.mxu0 %v599
  %1383 = vmatpush.msra.mxu0 %v598
  %1384 = vmatpush.msra.mxu0 %v597
  %1385 = vmatpush.msra.mxu0 %v596
  %1386 = vmatpush.msra.mxu0 %v595
  %1387 = vmatmul.f32.gmra.mxu0 %v45
  %v1388 = vpop.f32.mrf.mxu0
  %v1389 = vadd.f32 %v1369, %v1388
  %1390 = vdwg.mxu0
  %1391 = vmatpush.msra.mxu0 %v626
  %1392 = vmatpush.msra.mxu0 %v625
  %1393 = vmatpush.msra.mxu0 %v624
  %1394 = vmatpush.msra.mxu0 %v623
  %1395 = vmatpush.msra.mxu0 %v622
  %1396 = vmatpush.msra.mxu0 %v621
  %1397 = vmatpush.msra.mxu0 %v620
  %1398 = vmatpush.msra.mxu0 %v619
  %1399 = vmatpush.msra.mxu0 %v618
  %1400 = vmatpush.msra.mxu0 %v617
  %1401 = vmatpush.msra.mxu0 %v616
  %1402 = vmatpush.msra.mxu0 %v615
  %1403 = vmatpush.msra.mxu0 %v614
  %1404 = vmatpush.msra.mxu0 %v613
  %1405 = vmatpush.msra.mxu0 %v612
  %1406 = vmatpush.msra.mxu0 %v611
  %1407 = vmatmul.f32.gmra.mxu0 %v46
  %v1408 = vpop.f32.mrf.mxu0
  %v1409 = vadd.f32 %v1389, %v1408
  %1410 = vdwg.mxu0
  %1411 = vmatpush.msra.mxu0 %v642
  %1412 = vmatpush.msra.mxu0 %v641
  %1413 = vmatpush.msra.mxu0 %v640
  %1414 = vmatpush.msra.mxu0 %v639
  %1415 = vmatpush.msra.mxu0 %v638
  %1416 = vmatpush.msra.mxu0 %v637
  %1417 = vmatpush.msra.mxu0 %v636
  %1418 = vmatpush.msra.mxu0 %v635
  %1419 = vmatpush.msra.mxu0 %v634
  %1420 = vmatpush.msra.mxu0 %v633
  %1421 = vmatpush.msra.mxu0 %v632
  %1422 = vmatpush.msra.mxu0 %v631
  %1423 = vmatpush.msra.mxu0 %v630
  %1424 = vmatpush.msra.mxu0 %v629
  %1425 = vmatpush.msra.mxu0 %v628
  %1426 = vmatpush.msra.mxu0 %v627
  %1427 = vmatmul.f32.gmra.mxu0 %v47
  %v1428 = vpop.f32.mrf.mxu0
  %v1429 = vadd.f32 %v1409, %v1428
  %1430 = vdwg.mxu0
  %1431 = vmatpush.msra.mxu0 %v658
  %1432 = vmatpush.msra.mxu0 %v657
  %1433 = vmatpush.msra.mxu0 %v656
  %1434 = vmatpush.msra.mxu0 %v655
  %1435 = vmatpush.msra.mxu0 %v654
  %1436 = vmatpush.msra.mxu0 %v653
  %1437 = vmatpush.msra.mxu0 %v652
  %1438 = vmatpush.msra.mxu0 %v651
  %1439 = vmatpush.msra.mxu0 %v650
  %1440 = vmatpush.msra.mxu0 %v649
  %1441 = vmatpush.msra.mxu0 %v648
  %1442 = vmatpush.msra.mxu0 %v647
  %1443 = vmatpush.msra.mxu0 %v646
  %1444 = vmatpush.msra.mxu0 %v645
  %1445 = vmatpush.msra.mxu0 %v644
  %1446 = vmatpush.msra.mxu0 %v643
  %1447 = vmatmul.f32.gmra.mxu0 %v48
  %v1448 = vpop.f32.mrf.mxu0
  %v1449 = vadd.f32 %v1429, %v1448
  %1450 = vdwg.mxu0
  %1451 = vmatpush.msra.mxu0 %v674
  %1452 = vmatpush.msra.mxu0 %v673
  %1453 = vmatpush.msra.mxu0 %v672
  %1454 = vmatpush.msra.mxu0 %v671
  %1455 = vmatpush.msra.mxu0 %v670
  %1456 = vmatpush.msra.mxu0 %v669
  %1457 = vmatpush.msra.mxu0 %v668
  %1458 = vmatpush.msra.mxu0 %v667
  %1459 = vmatpush.msra.mxu0 %v666
  %1460 = vmatpush.msra.mxu0 %v665
  %1461 = vmatpush.msra.mxu0 %v664
  %1462 = vmatpush.msra.mxu0 %v663
  %1463 = vmatpush.msra.mxu0 %v662
  %1464 = vmatpush.msra.mxu0 %v661
  %1465 = vmatpush.msra.mxu0 %v660
  %1466 = vmatpush.msra.mxu0 %v659
  %1467 = vmatmul.f32.gmra.mxu0 %v49
  %v1468 = vpop.f32.mrf.mxu0
  %v1469 = vadd.f32 %v1449, %v1468
  %1470 = vdwg.mxu0
  %1471 = vmatpush.msra.mxu0 %v690
  %1472 = vmatpush.msra.mxu0 %v689
  %1473 = vmatpush.msra.mxu0 %v688
  %1474 = vmatpush.msra.mxu0 %v687
  %1475 = vmatpush.msra.mxu0 %v686
  %1476 = vmatpush.msra.mxu0 %v685
  %1477 = vmatpush.msra.mxu0 %v684
  %1478 = vmatpush.msra.mxu0 %v683
  %1479 = vmatpush.msra.mxu0 %v682
  %1480 = vmatpush.msra.mxu0 %v681
  %1481 = vmatpush.msra.mxu0 %v680
  %1482 = vmatpush.msra.mxu0 %v679
  %1483 = vmatpush.msra.mxu0 %v678
  %1484 = vmatpush.msra.mxu0 %v677
  %1485 = vmatpush.msra.mxu0 %v676
  %1486 = vmatpush.msra.mxu0 %v675
  %1487 = vmatmul.f32.gmra.mxu0 %v50
  %v1488 = vpop.f32.mrf.mxu0
  %v1489 = vadd.f32 %v1469, %v1488
  %1490 = vdwg.mxu0
  %vm1491 = vcmask 31744
  %1492 = vst.msk [vmem:[%s2] sm:$0xff] %vm1491, %v1489
  // Predicated region
  $region10: #{tpu_custom_call.1} parent=0 // pred_check
    _
  $region11: #{tpu_custom_call.1} parent=0 // pred_check_branch
    %1494 = sbr.rel (0) target = $region13
  $region12: #{tpu_custom_call.1} parent=0 // pred_region
    _
  $region13: #{tpu_custom_call.1} parent=0 // pred_fallthru
    _
  // Predicated region
  $region14: #{tpu_custom_call.1} parent=0 // pred_check
    _
  $region15: #{tpu_custom_call.1} parent=0 // pred_check_branch
    %1496 = sbr.rel (0) target = $region17
  $region16: #{tpu_custom_call.1} parent=0 // pred_region
    _
  $region17: #{tpu_custom_call.1} parent=0 // pred_fallthru
    _

</llo_original>
